<compile_context>
chip_gen: v6e
topology: v6e:2x2x1
jax: 0.10.0
libtpu: 0.0.40
codegen_flags: <defaults>
</compile_context>

<pallas_src>
import functools

import numpy as np
import jax
import jax.numpy as jnp
from jax.experimental import pallas as pl
from jax.experimental.pallas import tpu as pltpu

# ----------------------------------------------------------------------------
# Geometric-algebra constants for Cl(1,3)
# ----------------------------------------------------------------------------
MV_GRADES = np.array([0, 1, 1, 1, 1, 2, 2, 2, 2, 2, 2, 3, 3, 3, 3, 4], dtype=np.int32)
# invariant bilinear form sign per blade (metric diag(+,-,-,-)):
MV_METRIC = np.array(
    [+1.0,                       # 1
     +1.0, -1.0, -1.0, -1.0,     # e0 e1 e2 e3
     -1.0, -1.0, -1.0,           # e01 e02 e03
     +1.0, +1.0, +1.0,           # e12 e13 e23
     +1.0, +1.0, +1.0, -1.0,     # e012 e013 e023 e123
     -1.0],                      # e0123
    dtype=np.float32)

HEAD_PAD = 128   # per-head feature block padded to a full 128-lane tile
OUT_PAD = 128    # final output feature dim padded to a full 128-lane tile


# ----------------------------------------------------------------------------
# Logical EquiLinear parameters + pure-JAX reference (for validation)
# ----------------------------------------------------------------------------
def init_equilinear_params(key, in_mv, out_mv, in_s, out_s):
    k1, k2, k3, k4, k5, k6 = jax.random.split(key, 6)
    return {
        "w_equi": jax.random.normal(k1, (out_mv, in_mv, 5), jnp.float32) / np.sqrt(5.0 * in_mv),
        "w_s2mv": jax.random.normal(k2, (out_mv, in_s), jnp.float32) / np.sqrt(float(in_s)),
        "w_mv2s": jax.random.normal(k3, (out_s, in_mv), jnp.float32) / np.sqrt(float(in_mv)),
        "w_s2s":  jax.random.normal(k4, (out_s, in_s), jnp.float32) / np.sqrt(float(in_s)),
        "b_mv":   0.01 * jax.random.normal(k5, (out_mv,), jnp.float32),
        "b_s":    0.01 * jax.random.normal(k6, (out_s,), jnp.float32),
    }


def equilinear_ref(p, mv, s):
    """Pure-JAX EquiLinear: per-grade mv mixing + scalar<->mv-scalar mixing + bias."""
    prec = jax.lax.Precision.HIGHEST
    w_sel = p["w_equi"][:, :, jnp.asarray(MV_GRADES)]          # (out_mv, in_mv, 16)
    out_mv = jnp.einsum("...ix,oix->...ox", mv, w_sel, precision=prec)
    out_mv = out_mv.at[..., 0].add(jnp.matmul(s, p["w_s2mv"].T, precision=prec) + p["b_mv"])
    out_s = (jnp.matmul(mv[..., 0], p["w_mv2s"].T, precision=prec)
             + jnp.matmul(s, p["w_s2s"].T, precision=prec) + p["b_s"])
    return out_mv, out_s


def reference_forward(params, cfg, multivectors_kv, multivectors_q, scalars_kv, scalars_q):
    """Pure-JAX CrossAttention forward mirroring the PyTorch module."""
    prec = jax.lax.Precision.HIGHEST
    H, hmv, hs = cfg["num_heads"], cfg["hidden_mv_channels"], cfg["hidden_s_channels"]
    B, Sq = multivectors_q.shape[:2]
    Skv = multivectors_kv.shape[1]

    q_mv, q_s = equilinear_ref(params["q_linear"], multivectors_q, scalars_q)
    kv_mv, kv_s = equilinear_ref(params["kv_linear"], multivectors_kv, scalars_kv)
    k_mv, v_mv = jnp.split(kv_mv, 2, axis=-2)
    k_s, v_s = jnp.split(kv_s, 2, axis=-1)

    # '... items (hidden num_heads) x -> ... num_heads items hidden x'
    def sh_mv(x): return x.reshape(B, -1, hmv, H, 16).transpose(0, 3, 1, 2, 4)
    def sh_s(x): return x.reshape(B, -1, hs, H).transpose(0, 3, 1, 2)

    q_mv, k_mv, v_mv = sh_mv(q_mv), sh_mv(k_mv), sh_mv(v_mv)
    q_s, k_s, v_s = sh_s(q_s), sh_s(k_s), sh_s(v_s)

    metric = jnp.asarray(MV_METRIC)
    D = 16 * hmv + hs
    qf = jnp.concatenate([(q_mv * metric).reshape(B, H, Sq, hmv * 16), q_s], axis=-1)
    kf = jnp.concatenate([k_mv.reshape(B, H, Skv, hmv * 16), k_s], axis=-1)
    vf = jnp.concatenate([v_mv.reshape(B, H, Skv, hmv * 16), v_s], axis=-1)
    logits = jnp.einsum("bhqd,bhkd->bhqk", qf, kf, precision=prec) / np.sqrt(float(D))
    attn = jax.nn.softmax(logits, axis=-1)
    h = jnp.einsum("bhqk,bhkd->bhqd", attn, vf, precision=prec)

    h_mv = h[..., : hmv * 16].reshape(B, H, Sq, hmv, 16)
    h_s = h[..., hmv * 16:]
    if cfg["head_scale"]:
        hsc = params["head_scale"]
        h_mv = h_mv * hsc.reshape(1, H, 1, 1, 1)
        h_s = h_s * hsc.reshape(1, H, 1, 1)

    # '... n_heads n_items hidden x -> ... n_items (n_heads hidden) x'
    h_mv = h_mv.transpose(0, 2, 1, 3, 4).reshape(B, Sq, H * hmv, 16)
    h_s = h_s.transpose(0, 2, 1, 3).reshape(B, Sq, H * hs)
    return equilinear_ref(params["out_linear"], h_mv, h_s)


# ----------------------------------------------------------------------------
# Init-time weight folding: EquiLinear -> dense matrix, then head-split / metric /
# softmax-scale / head_scale / lane-padding baked into column (or row) layout.
# All numpy, free.
# ----------------------------------------------------------------------------
def _dense_fold(p, in_mv, in_s, out_mv, out_s):
    """Fold one EquiLinear into (Din, Dout) matrix + bias over x = [mv_flat | scalars]."""
    w_equi = np.asarray(p["w_equi"], np.float32)
    w_s2mv = np.asarray(p["w_s2mv"], np.float32)
    w_mv2s = np.asarray(p["w_mv2s"], np.float32)
    w_s2s = np.asarray(p["w_s2s"], np.float32)
    b_mv = np.asarray(p["b_mv"], np.float32)
    b_s = np.asarray(p["b_s"], np.float32)

    din, dout = in_mv * 16 + in_s, out_mv * 16 + out_s
    W = np.zeros((din, dout), np.float32)
    w_sel = w_equi[:, :, MV_GRADES]                                   # (out_mv, in_mv, 16)
    blk = np.einsum("oix,xy->ixoy", w_sel, np.eye(16, dtype=np.float32))
    W[: in_mv * 16, : out_mv * 16] = blk.reshape(in_mv * 16, out_mv * 16)
    W[in_mv * 16:, 0:out_mv * 16:16] = w_s2mv.T       # scalars -> mv scalar blade
    W[0:in_mv * 16:16, out_mv * 16:] = w_mv2s.T       # mv scalar blade -> scalars
    W[in_mv * 16:, out_mv * 16:] = w_s2s.T            # scalars -> scalars
    b = np.zeros((dout,), np.float32)
    b[0:out_mv * 16:16] = b_mv
    b[out_mv * 16:] = b_s
    return W, b


def _fold_q(W, b, H, hmv, hs, attn_scale):
    """Q: columns reordered to per-head 128-wide blocks; metric & 1/sqrt(D) baked in."""
    din = W.shape[0]
    dh_mv, out_mv_ch = hmv * 16, H * hmv
    Wf = np.zeros((din, H * HEAD_PAD), np.float32)
    bf = np.zeros((H * HEAD_PAD,), np.float32)
    for h in range(H):
        base = h * HEAD_PAD
        for c in range(hmv):
            for x in range(16):
                j = (c * H + h) * 16 + x                 # logical channel = c*H + h
                sc = float(MV_METRIC[x]) * attn_scale
                Wf[:, base + c * 16 + x] = W[:, j] * sc
                bf[base + c * 16 + x] = b[j] * sc
        for s_ in range(hs):
            j = out_mv_ch * 16 + s_ * H + h
            Wf[:, base + dh_mv + s_] = W[:, j] * attn_scale
            bf[base + dh_mv + s_] = b[j] * attn_scale
    return Wf, bf


def _fold_kv(W, b, H, hmv, hs):
    """KV: columns -> [K head0 | K head1 | ... | V head0 | V head1 | ...], each 128 wide."""
    din = W.shape[0]
    dh_mv, out_mv_ch = hmv * 16, 2 * H * hmv
    Wf = np.zeros((din, 2 * H * HEAD_PAD), np.float32)
    bf = np.zeros((2 * H * HEAD_PAD,), np.float32)
    for kv in range(2):                                   # 0 = K, 1 = V
        for h in range(H):
            base = (kv * H + h) * HEAD_PAD
            for c in range(hmv):
                for x in range(16):
                    j = (kv * H * hmv + c * H + h) * 16 + x
                    Wf[:, base + c * 16 + x] = W[:, j]
                    bf[base + c * 16 + x] = b[j]
            for s_ in range(hs):
                j = out_mv_ch * 16 + kv * H * hs + s_ * H + h
                Wf[:, base + dh_mv + s_] = W[:, j]
                bf[base + dh_mv + s_] = b[j]
    return Wf, bf


def _fold_out(W, b, H, hmv, hs, head_scale):
    """Out: rows reordered to the kernel's per-head layout, head_scale folded into rows,
    columns padded to 128."""
    dout = W.shape[1]
    dh_mv = hmv * 16
    Wf = np.zeros((H * HEAD_PAD, OUT_PAD), np.float32)
    bf = np.zeros((OUT_PAD,), np.float32)
    for h in range(H):
        base = h * HEAD_PAD
        sc = float(head_scale[h])
        for c in range(hmv):
            for x in range(16):
                r = (h * hmv + c) * 16 + x               # out_linear input is head-major
                Wf[base + c * 16 + x, :dout] = W[r, :] * sc
        for s_ in range(hs):
            r = (H * hmv) * 16 + h * hs + s_
            Wf[base + dh_mv + s_, :dout] = W[r, :] * sc
    bf[:dout] = b
    return Wf, bf


def build_folded_params(params, cfg):
    if cfg["multi_query"]:
        # TODO(synk): multi-query KV head sharing not implemented (matches module subset used).
        raise NotImplementedError("multi_query=True is not supported")
    H, hmv, hs = cfg["num_heads"], cfg["hidden_mv_channels"], cfg["hidden_s_channels"]
    assert hmv * 16 + hs <= HEAD_PAD
    assert cfg["out_mv_channels"] * 16 + cfg["out_s_channels"] <= OUT_PAD
    attn_scale = 1.0 / np.sqrt(float(16 * hmv + hs))

    Wq, bq = _dense_fold(params["q_linear"], cfg["in_q_mv_channels"], cfg["in_q_s_channels"],
                         H * hmv, H * hs)
    Wqf, bqf = _fold_q(Wq, bq, H, hmv, hs, attn_scale)
    Wkv, bkv = _dense_fold(params["kv_linear"], cfg["in_kv_mv_channels"], cfg["in_kv_s_channels"],
                           2 * H * hmv, 2 * H * hs)
    Wkvf, bkvf = _fold_kv(Wkv, bkv, H, hmv, hs)
    Wo, bo = _dense_fold(params["out_linear"], H * hmv, H * hs,
                         cfg["out_mv_channels"], cfg["out_s_channels"])
    head_scale = (np.asarray(params["head_scale"], np.float32) if cfg["head_scale"]
                  else np.ones((H,), np.float32))
    Wof, bof = _fold_out(Wo, bo, H, hmv, hs, head_scale)

    # Split Q/KV weight rows into the multivector-row block and the scalar-row block so the
    # kernel can consume mv and scalar inputs separately (no wrapper-side concat).
    nq_mv = cfg["in_q_mv_channels"] * 16
    nkv_mv = cfg["in_kv_mv_channels"] * 16
    return {
        "wq_mv": jnp.asarray(Wqf[:nq_mv]), "wq_s": jnp.asarray(Wqf[nq_mv:]),
        "bq": jnp.asarray(bqf)[None, :],
        "wkv_mv": jnp.asarray(Wkvf[:nkv_mv]), "wkv_s": jnp.asarray(Wkvf[nkv_mv:]),
        "bkv": jnp.asarray(bkvf)[None, :],
        "wout": jnp.asarray(Wof), "bout": jnp.asarray(bof)[None, :],
    }


# ----------------------------------------------------------------------------
# The fused Pallas kernel (one grid step per batch *block*; batches folded into M)
# ----------------------------------------------------------------------------
def _fused_cross_attention_kernel(xq_mv_ref, xq_s_ref, xkv_mv_ref, xkv_s_ref,
                                  wq_mv_ref, wq_s_ref, bq_ref,
                                  wkv_mv_ref, wkv_s_ref, bkv_ref,
                                  wout_ref, bout_ref, o_ref, *,
                                  num_heads, head_pad, out_pad,
                                  batch_per_block, sq, skv):
    f32 = jnp.float32

    # Q / KV projections over ALL (batch, item) rows of this block at once: batches are
    # folded into the matmul M dimension so the MXU sees B*S rows instead of S.
    # Metric, softmax scale, head split & lane padding are baked into the folded weights,
    # so each head is a clean 128-lane-aligned column block.
    yq = (jnp.dot(xq_mv_ref[...], wq_mv_ref[...], preferred_element_type=f32)
          + jnp.dot(xq_s_ref[...], wq_s_ref[...], preferred_element_type=f32)
          + bq_ref[...])
    ykv = (jnp.dot(xkv_mv_ref[...], wkv_mv_ref[...], preferred_element_type=f32)
           + jnp.dot(xkv_s_ref[...], wkv_s_ref[...], preferred_element_type=f32)
           + bkv_ref[...])
    bout = bout_ref[...]                                                          # (1, out_pad)

    # Tiny static unroll over (batch, head); per-head results accumulate straight into the
    # out-projection (no lane-concat, small vreg live ranges).
    for b in range(batch_per_block):
        acc = jnp.zeros((sq, out_pad), f32)
        for h in range(num_heads):
            q = yq[b * sq:(b + 1) * sq, h * head_pad:(h + 1) * head_pad]          # (Sq, 128)
            k = ykv[b * skv:(b + 1) * skv, h * head_pad:(h + 1) * head_pad]       # (Skv, 128)
            v = ykv[b * skv:(b + 1) * skv,
                    (num_heads + h) * head_pad:(num_heads + h + 1) * head_pad]    # (Skv, 128)
            # logits[i, j] = sum_d q[i, d] * k[j, d] (scale & metric already folded into q).
            # NOTE: contracting both lane dims implies a k transpose on the XLU; at these
            # KV tile sizes the XLU slot has slack, so leave it.
            s = jax.lax.dot_general(q, k, (((1,), (1,)), ((), ())),
                                    preferred_element_type=f32)                   # (Sq, Skv)
            m = jnp.max(s, axis=-1, keepdims=True)
            p = jnp.exp(s - m)
            inv = 1.0 / jnp.sum(p, axis=-1, keepdims=True)   # exact divide (approx recip
            #                                                   broke the 2e-3 tolerance)
            if skv < head_pad:
                # normalize before PV: scales (Sq, Skv) elements instead of (Sq, 128)
                attn = jnp.dot(p * inv, v, preferred_element_type=f32)            # (Sq, 128)
            else:
                attn = jnp.dot(p, v, preferred_element_type=f32) * inv
            # head_scale is folded into wout rows; padded lanes of attn are exactly zero
            # (padded wkv columns are zero), padded wout rows are zero too.
            acc = acc + jnp.dot(attn, wout_ref[h * head_pad:(h + 1) * head_pad, :],
                                preferred_element_type=f32)
        o_ref[b * sq:(b + 1) * sq, :] = (acc + bout).astype(o_ref.dtype)


def cross_attention_pallas(folded, multivectors_kv, multivectors_q, scalars_kv, scalars_q,
                           *, cfg, batch_blocks=1):
    """Fused CrossAttention forward. `cfg` / `batch_blocks` are static (bound via partial).

    batch_blocks=1 folds all batches into one grid step (best on single-TC v5e/v6e);
    set batch_blocks=2 on v7x to shard across its 2 TensorCores at larger B.
    """
    if cfg["multi_query"]:
        raise NotImplementedError("multi_query=True is not supported")
    H = cfg["num_heads"]
    out_mv_ch, out_s_ch = cfg["out_mv_channels"], cfg["out_s_channels"]
    B, Sq = multivectors_q.shape[:2]
    Skv = multivectors_kv.shape[1]
    assert B % batch_blocks == 0
    bpb = B // batch_blocks

    # Flatten: batches folded into rows; mv blades flattened. Scalars stay separate
    # (no concatenate -> no extra HBM materialization before the kernel).
    xq_mv = multivectors_q.reshape(B * Sq, -1)
    xq_s = scalars_q.reshape(B * Sq, -1)
    xkv_mv = multivectors_kv.reshape(B * Skv, -1)
    xkv_s = scalars_kv.reshape(B * Skv, -1)
    dq_mv, dq_s = xq_mv.shape[-1], xq_s.shape[-1]
    dkv_mv, dkv_s = xkv_mv.shape[-1], xkv_s.shape[-1]

    kern = functools.partial(_fused_cross_attention_kernel,
                             num_heads=H, head_pad=HEAD_PAD, out_pad=OUT_PAD,
                             batch_per_block=bpb, sq=Sq, skv=Skv)

    def const(i):                      # weights stay VMEM-resident across grid steps
        return (0, 0)

    y = pl.pallas_call(
        kern,
        out_shape=jax.ShapeDtypeStruct((B * Sq, OUT_PAD), jnp.float32),
        grid=(batch_blocks,),
        in_specs=[
            pl.BlockSpec((bpb * Sq, dq_mv), lambda i: (i, 0)),       # xq multivector rows
            pl.BlockSpec((bpb * Sq, dq_s), lambda i: (i, 0)),        # xq scalar rows
            pl.BlockSpec((bpb * Skv, dkv_mv), lambda i: (i, 0)),     # xkv multivector rows
            pl.BlockSpec((bpb * Skv, dkv_s), lambda i: (i, 0)),      # xkv scalar rows
            pl.BlockSpec((dq_mv, H * HEAD_PAD), const),              # Wq (mv rows)
            pl.BlockSpec((dq_s, H * HEAD_PAD), const),               # Wq (scalar rows)
            pl.BlockSpec((1, H * HEAD_PAD), const),                  # bq
            pl.BlockSpec((dkv_mv, 2 * H * HEAD_PAD), const),         # Wkv (mv rows)
            pl.BlockSpec((dkv_s, 2 * H * HEAD_PAD), const),          # Wkv (scalar rows)
            pl.BlockSpec((1, 2 * H * HEAD_PAD), const),              # bkv
            pl.BlockSpec((H * HEAD_PAD, OUT_PAD), const),            # Wout (head_scale folded)
            pl.BlockSpec((1, OUT_PAD), const),                       # bout
        ],
        out_specs=pl.BlockSpec((bpb * Sq, OUT_PAD), lambda i: (i, 0)),
        compiler_params=pltpu.CompilerParams(
            dimension_semantics=("parallel",),
        ),
    )(xq_mv, xq_s, xkv_mv, xkv_s,
      folded["wq_mv"], folded["wq_s"], folded["bq"],
      folded["wkv_mv"], folded["wkv_s"], folded["bkv"],
      folded["wout"], folded["bout"])

    out_mv = y[:, : out_mv_ch * 16].reshape(B, Sq, out_mv_ch, 16)
    out_s = y[:, out_mv_ch * 16: out_mv_ch * 16 + out_s_ch].reshape(B, Sq, out_s_ch)
    # TODO(synk): GradeDropout is a no-op here (dropout_prob=None / eval mode).
    return out_mv, out_s


# ----------------------------------------------------------------------------
# main
# ----------------------------------------------------------------------------
if __name__ == "__main__":
    cfg = dict(
        in_q_mv_channels=3, in_q_s_channels=4,
        in_kv_mv_channels=3, in_kv_s_channels=4,
        out_mv_channels=3, out_s_channels=4,
        hidden_mv_channels=2, hidden_s_channels=4,
        num_heads=2, multi_query=False, head_scale=True,
    )
    B, Sq, Skv = 2, 8, 16
    H, hmv, hs = cfg["num_heads"], cfg["hidden_mv_channels"], cfg["hidden_s_channels"]

    key = jax.random.PRNGKey(0)
    kq, kkv, kout, khs, kx1, kx2, kx3, kx4 = jax.random.split(key, 8)

    params = {
        "q_linear": init_equilinear_params(kq, cfg["in_q_mv_channels"], hmv * H,
                                           cfg["in_q_s_channels"], hs * H),
        "kv_linear": init_equilinear_params(kkv, cfg["in_kv_mv_channels"], 2 * hmv * H,
                                            cfg["in_kv_s_channels"], 2 * hs * H),
        "out_linear": init_equilinear_params(kout, hmv * H, cfg["out_mv_channels"],
                                             hs * H, cfg["out_s_channels"]),
        # nn.Parameter(torch.ones(num_heads)) — perturbed a bit so the fold is actually tested
        "head_scale": 1.0 + 0.1 * jax.random.normal(khs, (H,), jnp.float32),
    }
    folded = build_folded_params(params, cfg)

    multivectors_kv = jax.random.normal(kx1, (B, Skv, cfg["in_kv_mv_channels"], 16), jnp.float32)
    multivectors_q = jax.random.normal(kx2, (B, Sq, cfg["in_q_mv_channels"], 16), jnp.float32)
    scalars_kv = jax.random.normal(kx3, (B, Skv, cfg["in_kv_s_channels"]), jnp.float32)
    scalars_q = jax.random.normal(kx4, (B, Sq, cfg["in_q_s_channels"]), jnp.float32)

    # cfg / batch_blocks are bound statically via partial -> no Python ints become tracers.
    fwd = jax.jit(functools.partial(cross_attention_pallas, cfg=cfg, batch_blocks=1))
    out_mv, out_s = fwd(folded, multivectors_kv, multivectors_q, scalars_kv, scalars_q)
    jax.block_until_ready((out_mv, out_s))

    # pure-JAX reference for sanity
    ref_mv, ref_s = reference_forward(params, cfg, multivectors_kv, multivectors_q,
                                      scalars_kv, scalars_q)
    np.testing.assert_allclose(np.asarray(out_mv), np.asarray(ref_mv), atol=2e-3, rtol=2e-3)
    np.testing.assert_allclose(np.asarray(out_s), np.asarray(ref_s), atol=2e-3, rtol=2e-3)
    assert out_mv.shape == (B, Sq, cfg["out_mv_channels"], 16)
    assert out_s.shape == (B, Sq, cfg["out_s_channels"])

    print("KERNEL_OK")
</pallas_src>

<mosaic_0001>
module attributes {stable_mosaic.version = 11 : i64} {
  func.func @_fused_cross_attention_kernel(%arg0: i32, %arg1: memref<16x48xf32, #tpu.memory_space<vmem>>, %arg2: memref<16x4xf32, #tpu.memory_space<vmem>>, %arg3: memref<32x48xf32, #tpu.memory_space<vmem>>, %arg4: memref<32x4xf32, #tpu.memory_space<vmem>>, %arg5: memref<48x256xf32, #tpu.memory_space<vmem>>, %arg6: memref<4x256xf32, #tpu.memory_space<vmem>>, %arg7: memref<1x256xf32, #tpu.memory_space<vmem>>, %arg8: memref<48x512xf32, #tpu.memory_space<vmem>>, %arg9: memref<4x512xf32, #tpu.memory_space<vmem>>, %arg10: memref<1x512xf32, #tpu.memory_space<vmem>>, %arg11: memref<256x128xf32, #tpu.memory_space<vmem>>, %arg12: memref<1x128xf32, #tpu.memory_space<vmem>>, %arg13: memref<16x128xf32, #tpu.memory_space<vmem>>) attributes {dimension_semantics = [#tpu.dimension_semantics<parallel>], iteration_bounds = array<i64: 1>, scalar_prefetch = 0 : i64, scratch_operands = 0 : i64, tpu.core_type = #tpu.core_type<tc>, window_params = [{transform_indices = @transform_0, window_bounds = array<i64: 16, 48>}, {transform_indices = @transform_1, window_bounds = array<i64: 16, 4>}, {transform_indices = @transform_2, window_bounds = array<i64: 32, 48>}, {transform_indices = @transform_3, window_bounds = array<i64: 32, 4>}, {pipeline_mode = #tpu.pipeline_mode<synchronous>, transform_indices = @transform_4, window_bounds = array<i64: 48, 256>}, {pipeline_mode = #tpu.pipeline_mode<synchronous>, transform_indices = @transform_5, window_bounds = array<i64: 4, 256>}, {pipeline_mode = #tpu.pipeline_mode<synchronous>, transform_indices = @transform_6, window_bounds = array<i64: 1, 256>}, {pipeline_mode = #tpu.pipeline_mode<synchronous>, transform_indices = @transform_7, window_bounds = array<i64: 48, 512>}, {pipeline_mode = #tpu.pipeline_mode<synchronous>, transform_indices = @transform_8, window_bounds = array<i64: 4, 512>}, {pipeline_mode = #tpu.pipeline_mode<synchronous>, transform_indices = @transform_9, window_bounds = array<i64: 1, 512>}, {pipeline_mode = #tpu.pipeline_mode<synchronous>, transform_indices = @transform_10, window_bounds = array<i64: 256, 128>}, {pipeline_mode = #tpu.pipeline_mode<synchronous>, transform_indices = @transform_11, window_bounds = array<i64: 1, 128>}, {transform_indices = @transform_12, window_bounds = array<i64: 16, 128>}]} {
    %c0 = arith.constant 0 : index
    %c0_0 = arith.constant 0 : index
    %0 = vector.load %arg1[%c0, %c0_0] : memref<16x48xf32, #tpu.memory_space<vmem>>, vector<16x48xf32>
    %c0_1 = arith.constant 0 : index
    %c0_2 = arith.constant 0 : index
    %1 = vector.load %arg5[%c0_1, %c0_2] : memref<48x256xf32, #tpu.memory_space<vmem>>, vector<48x256xf32>
    %cst = arith.constant dense<0.000000e+00> : vector<16x256xf32>
    %2 = tpu.matmul %0, %1, %cst {dimension_numbers = #tpu.dot_dimension_numbers<[1], [0], [0], [1], [0, 0, 1, 1], [], []>} : vector<16x48xf32>, vector<48x256xf32>, vector<16x256xf32> -> vector<16x256xf32>
    %c0_3 = arith.constant 0 : index
    %c0_4 = arith.constant 0 : index
    %3 = vector.load %arg2[%c0_3, %c0_4] : memref<16x4xf32, #tpu.memory_space<vmem>>, vector<16x4xf32>
    %c0_5 = arith.constant 0 : index
    %c0_6 = arith.constant 0 : index
    %4 = vector.load %arg6[%c0_5, %c0_6] : memref<4x256xf32, #tpu.memory_space<vmem>>, vector<4x256xf32>
    %cst_7 = arith.constant dense<0.000000e+00> : vector<16x256xf32>
    %5 = tpu.matmul %3, %4, %cst_7 {dimension_numbers = #tpu.dot_dimension_numbers<[1], [0], [0], [1], [0, 0, 1, 1], [], []>} : vector<16x4xf32>, vector<4x256xf32>, vector<16x256xf32> -> vector<16x256xf32>
    %6 = arith.addf %2, %5 : vector<16x256xf32>
    %c0_8 = arith.constant 0 : index
    %c0_9 = arith.constant 0 : index
    %7 = vector.load %arg7[%c0_8, %c0_9] : memref<1x256xf32, #tpu.memory_space<vmem>>, vector<1x256xf32>
    %8 = vector.broadcast %7 : vector<1x256xf32> to vector<16x256xf32>
    %9 = arith.addf %6, %8 : vector<16x256xf32>
    %c0_10 = arith.constant 0 : index
    %c0_11 = arith.constant 0 : index
    %10 = vector.load %arg3[%c0_10, %c0_11] : memref<32x48xf32, #tpu.memory_space<vmem>>, vector<32x48xf32>
    %c0_12 = arith.constant 0 : index
    %c0_13 = arith.constant 0 : index
    %11 = vector.load %arg8[%c0_12, %c0_13] : memref<48x512xf32, #tpu.memory_space<vmem>>, vector<48x512xf32>
    %cst_14 = arith.constant dense<0.000000e+00> : vector<32x512xf32>
    %12 = tpu.matmul %10, %11, %cst_14 {dimension_numbers = #tpu.dot_dimension_numbers<[1], [0], [0], [1], [0, 0, 1, 1], [], []>} : vector<32x48xf32>, vector<48x512xf32>, vector<32x512xf32> -> vector<32x512xf32>
    %c0_15 = arith.constant 0 : index
    %c0_16 = arith.constant 0 : index
    %13 = vector.load %arg4[%c0_15, %c0_16] : memref<32x4xf32, #tpu.memory_space<vmem>>, vector<32x4xf32>
    %c0_17 = arith.constant 0 : index
    %c0_18 = arith.constant 0 : index
    %14 = vector.load %arg9[%c0_17, %c0_18] : memref<4x512xf32, #tpu.memory_space<vmem>>, vector<4x512xf32>
    %cst_19 = arith.constant dense<0.000000e+00> : vector<32x512xf32>
    %15 = tpu.matmul %13, %14, %cst_19 {dimension_numbers = #tpu.dot_dimension_numbers<[1], [0], [0], [1], [0, 0, 1, 1], [], []>} : vector<32x4xf32>, vector<4x512xf32>, vector<32x512xf32> -> vector<32x512xf32>
    %16 = arith.addf %12, %15 : vector<32x512xf32>
    %c0_20 = arith.constant 0 : index
    %c0_21 = arith.constant 0 : index
    %17 = vector.load %arg10[%c0_20, %c0_21] : memref<1x512xf32, #tpu.memory_space<vmem>>, vector<1x512xf32>
    %18 = vector.broadcast %17 : vector<1x512xf32> to vector<32x512xf32>
    %19 = arith.addf %16, %18 : vector<32x512xf32>
    %c0_22 = arith.constant 0 : index
    %c0_23 = arith.constant 0 : index
    %20 = vector.load %arg12[%c0_22, %c0_23] : memref<1x128xf32, #tpu.memory_space<vmem>>, vector<1x128xf32>
    %cst_24 = arith.constant 0.000000e+00 : f32
    %21 = vector.broadcast %cst_24 : f32 to vector<8x128xf32>
    %22 = vector.extract_strided_slice %9 {offsets = [0, 0], sizes = [8, 128], strides = [1, 1]} : vector<16x256xf32> to vector<8x128xf32>
    %23 = vector.extract_strided_slice %19 {offsets = [0, 0], sizes = [16, 128], strides = [1, 1]} : vector<32x512xf32> to vector<16x128xf32>
    %24 = vector.extract_strided_slice %19 {offsets = [0, 256], sizes = [16, 128], strides = [1, 1]} : vector<32x512xf32> to vector<16x128xf32>
    %cst_25 = arith.constant dense<0.000000e+00> : vector<8x16xf32>
    %25 = tpu.matmul %22, %23, %cst_25 {dimension_numbers = #tpu.dot_dimension_numbers<[1], [1], [0], [0], [0, 0, 1, 0], [], []>} : vector<8x128xf32>, vector<16x128xf32>, vector<8x16xf32> -> vector<8x16xf32>
    %cst_26 = arith.constant dense<0xFF800000> : vector<8xf32>
    %26 = vector.multi_reduction <maximumf>, %25, %cst_26 [1] : vector<8x16xf32> to vector<8xf32>
    %27 = vector.shape_cast %26 : vector<8xf32> to vector<8x1xf32>
    %28 = vector.broadcast %27 : vector<8x1xf32> to vector<8x16xf32>
    %29 = arith.subf %25, %28 : vector<8x16xf32>
    %30 = math.exp %29 : vector<8x16xf32>
    %cst_27 = arith.constant dense<0.000000e+00> : vector<8xf32>
    %31 = vector.multi_reduction <add>, %30, %cst_27 [1] : vector<8x16xf32> to vector<8xf32>
    %32 = vector.shape_cast %31 : vector<8xf32> to vector<8x1xf32>
    %cst_28 = arith.constant 1.000000e+00 : f32
    %33 = vector.broadcast %cst_28 : f32 to vector<8x1xf32>
    %34 = arith.divf %33, %32 : vector<8x1xf32>
    %35 = vector.broadcast %34 : vector<8x1xf32> to vector<8x16xf32>
    %36 = arith.mulf %30, %35 : vector<8x16xf32>
    %cst_29 = arith.constant dense<0.000000e+00> : vector<8x128xf32>
    %37 = tpu.matmul %36, %24, %cst_29 {dimension_numbers = #tpu.dot_dimension_numbers<[1], [0], [0], [1], [0, 0, 1, 1], [], []>} : vector<8x16xf32>, vector<16x128xf32>, vector<8x128xf32> -> vector<8x128xf32>
    %c0_30 = arith.constant 0 : index
    %c0_31 = arith.constant 0 : index
    %38 = vector.load %arg11[%c0_30, %c0_31] : memref<256x128xf32, #tpu.memory_space<vmem>>, vector<128x128xf32>
    %cst_32 = arith.constant dense<0.000000e+00> : vector<8x128xf32>
    %39 = tpu.matmul %37, %38, %cst_32 {dimension_numbers = #tpu.dot_dimension_numbers<[1], [0], [0], [1], [0, 0, 1, 1], [], []>} : vector<8x128xf32>, vector<128x128xf32>, vector<8x128xf32> -> vector<8x128xf32>
    %40 = arith.addf %21, %39 : vector<8x128xf32>
    %41 = vector.extract_strided_slice %9 {offsets = [0, 128], sizes = [8, 128], strides = [1, 1]} : vector<16x256xf32> to vector<8x128xf32>
    %42 = vector.extract_strided_slice %19 {offsets = [0, 128], sizes = [16, 128], strides = [1, 1]} : vector<32x512xf32> to vector<16x128xf32>
    %43 = vector.extract_strided_slice %19 {offsets = [0, 384], sizes = [16, 128], strides = [1, 1]} : vector<32x512xf32> to vector<16x128xf32>
    %cst_33 = arith.constant dense<0.000000e+00> : vector<8x16xf32>
    %44 = tpu.matmul %41, %42, %cst_33 {dimension_numbers = #tpu.dot_dimension_numbers<[1], [1], [0], [0], [0, 0, 1, 0], [], []>} : vector<8x128xf32>, vector<16x128xf32>, vector<8x16xf32> -> vector<8x16xf32>
    %cst_34 = arith.constant dense<0xFF800000> : vector<8xf32>
    %45 = vector.multi_reduction <maximumf>, %44, %cst_34 [1] : vector<8x16xf32> to vector<8xf32>
    %46 = vector.shape_cast %45 : vector<8xf32> to vector<8x1xf32>
    %47 = vector.broadcast %46 : vector<8x1xf32> to vector<8x16xf32>
    %48 = arith.subf %44, %47 : vector<8x16xf32>
    %49 = math.exp %48 : vector<8x16xf32>
    %cst_35 = arith.constant dense<0.000000e+00> : vector<8xf32>
    %50 = vector.multi_reduction <add>, %49, %cst_35 [1] : vector<8x16xf32> to vector<8xf32>
    %51 = vector.shape_cast %50 : vector<8xf32> to vector<8x1xf32>
    %cst_36 = arith.constant 1.000000e+00 : f32
    %52 = vector.broadcast %cst_36 : f32 to vector<8x1xf32>
    %53 = arith.divf %52, %51 : vector<8x1xf32>
    %54 = vector.broadcast %53 : vector<8x1xf32> to vector<8x16xf32>
    %55 = arith.mulf %49, %54 : vector<8x16xf32>
    %cst_37 = arith.constant dense<0.000000e+00> : vector<8x128xf32>
    %56 = tpu.matmul %55, %43, %cst_37 {dimension_numbers = #tpu.dot_dimension_numbers<[1], [0], [0], [1], [0, 0, 1, 1], [], []>} : vector<8x16xf32>, vector<16x128xf32>, vector<8x128xf32> -> vector<8x128xf32>
    %c128 = arith.constant 128 : index
    %c0_38 = arith.constant 0 : index
    %57 = vector.load %arg11[%c128, %c0_38] : memref<256x128xf32, #tpu.memory_space<vmem>>, vector<128x128xf32>
    %cst_39 = arith.constant dense<0.000000e+00> : vector<8x128xf32>
    %58 = tpu.matmul %56, %57, %cst_39 {dimension_numbers = #tpu.dot_dimension_numbers<[1], [0], [0], [1], [0, 0, 1, 1], [], []>} : vector<8x128xf32>, vector<128x128xf32>, vector<8x128xf32> -> vector<8x128xf32>
    %59 = arith.addf %40, %58 : vector<8x128xf32>
    %60 = vector.broadcast %20 : vector<1x128xf32> to vector<8x128xf32>
    %61 = arith.addf %59, %60 : vector<8x128xf32>
    %c0_40 = arith.constant 0 : index
    %c0_41 = arith.constant 0 : index
    %62 = vector.load %arg13[%c0_40, %c0_41] : memref<16x128xf32, #tpu.memory_space<vmem>>, vector<8x128xf32>
    tpu.vector_store %arg13[%c0_40, %c0_41], %61 {strides = array<i32>} : memref<16x128xf32, #tpu.memory_space<vmem>>, vector<8x128xf32>,
    %cst_42 = arith.constant 0.000000e+00 : f32
    %63 = vector.broadcast %cst_42 : f32 to vector<8x128xf32>
    %64 = vector.extract_strided_slice %9 {offsets = [8, 0], sizes = [8, 128], strides = [1, 1]} : vector<16x256xf32> to vector<8x128xf32>
    %65 = vector.extract_strided_slice %19 {offsets = [16, 0], sizes = [16, 128], strides = [1, 1]} : vector<32x512xf32> to vector<16x128xf32>
    %66 = vector.extract_strided_slice %19 {offsets = [16, 256], sizes = [16, 128], strides = [1, 1]} : vector<32x512xf32> to vector<16x128xf32>
    %cst_43 = arith.constant dense<0.000000e+00> : vector<8x16xf32>
    %67 = tpu.matmul %64, %65, %cst_43 {dimension_numbers = #tpu.dot_dimension_numbers<[1], [1], [0], [0], [0, 0, 1, 0], [], []>} : vector<8x128xf32>, vector<16x128xf32>, vector<8x16xf32> -> vector<8x16xf32>
    %cst_44 = arith.constant dense<0xFF800000> : vector<8xf32>
    %68 = vector.multi_reduction <maximumf>, %67, %cst_44 [1] : vector<8x16xf32> to vector<8xf32>
    %69 = vector.shape_cast %68 : vector<8xf32> to vector<8x1xf32>
    %70 = vector.broadcast %69 : vector<8x1xf32> to vector<8x16xf32>
    %71 = arith.subf %67, %70 : vector<8x16xf32>
    %72 = math.exp %71 : vector<8x16xf32>
    %cst_45 = arith.constant dense<0.000000e+00> : vector<8xf32>
    %73 = vector.multi_reduction <add>, %72, %cst_45 [1] : vector<8x16xf32> to vector<8xf32>
    %74 = vector.shape_cast %73 : vector<8xf32> to vector<8x1xf32>
    %cst_46 = arith.constant 1.000000e+00 : f32
    %75 = vector.broadcast %cst_46 : f32 to vector<8x1xf32>
    %76 = arith.divf %75, %74 : vector<8x1xf32>
    %77 = vector.broadcast %76 : vector<8x1xf32> to vector<8x16xf32>
    %78 = arith.mulf %72, %77 : vector<8x16xf32>
    %cst_47 = arith.constant dense<0.000000e+00> : vector<8x128xf32>
    %79 = tpu.matmul %78, %66, %cst_47 {dimension_numbers = #tpu.dot_dimension_numbers<[1], [0], [0], [1], [0, 0, 1, 1], [], []>} : vector<8x16xf32>, vector<16x128xf32>, vector<8x128xf32> -> vector<8x128xf32>
    %c0_48 = arith.constant 0 : index
    %c0_49 = arith.constant 0 : index
    %80 = vector.load %arg11[%c0_48, %c0_49] : memref<256x128xf32, #tpu.memory_space<vmem>>, vector<128x128xf32>
    %cst_50 = arith.constant dense<0.000000e+00> : vector<8x128xf32>
    %81 = tpu.matmul %79, %80, %cst_50 {dimension_numbers = #tpu.dot_dimension_numbers<[1], [0], [0], [1], [0, 0, 1, 1], [], []>} : vector<8x128xf32>, vector<128x128xf32>, vector<8x128xf32> -> vector<8x128xf32>
    %82 = arith.addf %63, %81 : vector<8x128xf32>
    %83 = vector.extract_strided_slice %9 {offsets = [8, 128], sizes = [8, 128], strides = [1, 1]} : vector<16x256xf32> to vector<8x128xf32>
    %84 = vector.extract_strided_slice %19 {offsets = [16, 128], sizes = [16, 128], strides = [1, 1]} : vector<32x512xf32> to vector<16x128xf32>
    %85 = vector.extract_strided_slice %19 {offsets = [16, 384], sizes = [16, 128], strides = [1, 1]} : vector<32x512xf32> to vector<16x128xf32>
    %cst_51 = arith.constant dense<0.000000e+00> : vector<8x16xf32>
    %86 = tpu.matmul %83, %84, %cst_51 {dimension_numbers = #tpu.dot_dimension_numbers<[1], [1], [0], [0], [0, 0, 1, 0], [], []>} : vector<8x128xf32>, vector<16x128xf32>, vector<8x16xf32> -> vector<8x16xf32>
    %cst_52 = arith.constant dense<0xFF800000> : vector<8xf32>
    %87 = vector.multi_reduction <maximumf>, %86, %cst_52 [1] : vector<8x16xf32> to vector<8xf32>
    %88 = vector.shape_cast %87 : vector<8xf32> to vector<8x1xf32>
    %89 = vector.broadcast %88 : vector<8x1xf32> to vector<8x16xf32>
    %90 = arith.subf %86, %89 : vector<8x16xf32>
    %91 = math.exp %90 : vector<8x16xf32>
    %cst_53 = arith.constant dense<0.000000e+00> : vector<8xf32>
    %92 = vector.multi_reduction <add>, %91, %cst_53 [1] : vector<8x16xf32> to vector<8xf32>
    %93 = vector.shape_cast %92 : vector<8xf32> to vector<8x1xf32>
    %cst_54 = arith.constant 1.000000e+00 : f32
    %94 = vector.broadcast %cst_54 : f32 to vector<8x1xf32>
    %95 = arith.divf %94, %93 : vector<8x1xf32>
    %96 = vector.broadcast %95 : vector<8x1xf32> to vector<8x16xf32>
    %97 = arith.mulf %91, %96 : vector<8x16xf32>
    %cst_55 = arith.constant dense<0.000000e+00> : vector<8x128xf32>
    %98 = tpu.matmul %97, %85, %cst_55 {dimension_numbers = #tpu.dot_dimension_numbers<[1], [0], [0], [1], [0, 0, 1, 1], [], []>} : vector<8x16xf32>, vector<16x128xf32>, vector<8x128xf32> -> vector<8x128xf32>
    %c128_56 = arith.constant 128 : index
    %c0_57 = arith.constant 0 : index
    %99 = vector.load %arg11[%c128_56, %c0_57] : memref<256x128xf32, #tpu.memory_space<vmem>>, vector<128x128xf32>
    %cst_58 = arith.constant dense<0.000000e+00> : vector<8x128xf32>
    %100 = tpu.matmul %98, %99, %cst_58 {dimension_numbers = #tpu.dot_dimension_numbers<[1], [0], [0], [1], [0, 0, 1, 1], [], []>} : vector<8x128xf32>, vector<128x128xf32>, vector<8x128xf32> -> vector<8x128xf32>
    %101 = arith.addf %82, %100 : vector<8x128xf32>
    %102 = vector.broadcast %20 : vector<1x128xf32> to vector<8x128xf32>
    %103 = arith.addf %101, %102 : vector<8x128xf32>
    %c8 = arith.constant 8 : index
    %c0_59 = arith.constant 0 : index
    %104 = vector.load %arg13[%c8, %c0_59] : memref<16x128xf32, #tpu.memory_space<vmem>>, vector<8x128xf32>
    tpu.vector_store %arg13[%c8, %c0_59], %103 {strides = array<i32>} : memref<16x128xf32, #tpu.memory_space<vmem>>, vector<8x128xf32>,
    return
  }
  func.func @transform_0(%arg0: i32) -> (i32, i32) {
    %c0_i32 = arith.constant 0 : i32
    %c0_i32_0 = arith.constant 0 : i32
    return %arg0, %c0_i32 : i32, i32
  }
  func.func @transform_1(%arg0: i32) -> (i32, i32) {
    %c0_i32 = arith.constant 0 : i32
    %c0_i32_0 = arith.constant 0 : i32
    return %arg0, %c0_i32 : i32, i32
  }
  func.func @transform_2(%arg0: i32) -> (i32, i32) {
    %c0_i32 = arith.constant 0 : i32
    %c0_i32_0 = arith.constant 0 : i32
    return %arg0, %c0_i32 : i32, i32
  }
  func.func @transform_3(%arg0: i32) -> (i32, i32) {
    %c0_i32 = arith.constant 0 : i32
    %c0_i32_0 = arith.constant 0 : i32
    return %arg0, %c0_i32 : i32, i32
  }
  func.func @transform_4(%arg0: i32) -> (i32, i32) {
    %c0_i32 = arith.constant 0 : i32
    %c0_i32_0 = arith.constant 0 : i32
    %c0_i32_1 = arith.constant 0 : i32
    return %c0_i32, %c0_i32_0 : i32, i32
  }
  func.func @transform_5(%arg0: i32) -> (i32, i32) {
    %c0_i32 = arith.constant 0 : i32
    %c0_i32_0 = arith.constant 0 : i32
    %c0_i32_1 = arith.constant 0 : i32
    return %c0_i32, %c0_i32_0 : i32, i32
  }
  func.func @transform_6(%arg0: i32) -> (i32, i32) {
    %c0_i32 = arith.constant 0 : i32
    %c0_i32_0 = arith.constant 0 : i32
    %c0_i32_1 = arith.constant 0 : i32
    return %c0_i32, %c0_i32_0 : i32, i32
  }
  func.func @transform_7(%arg0: i32) -> (i32, i32) {
    %c0_i32 = arith.constant 0 : i32
    %c0_i32_0 = arith.constant 0 : i32
    %c0_i32_1 = arith.constant 0 : i32
    return %c0_i32, %c0_i32_0 : i32, i32
  }
  func.func @transform_8(%arg0: i32) -> (i32, i32) {
    %c0_i32 = arith.constant 0 : i32
    %c0_i32_0 = arith.constant 0 : i32
    %c0_i32_1 = arith.constant 0 : i32
    return %c0_i32, %c0_i32_0 : i32, i32
  }
  func.func @transform_9(%arg0: i32) -> (i32, i32) {
    %c0_i32 = arith.constant 0 : i32
    %c0_i32_0 = arith.constant 0 : i32
    %c0_i32_1 = arith.constant 0 : i32
    return %c0_i32, %c0_i32_0 : i32, i32
  }
  func.func @transform_10(%arg0: i32) -> (i32, i32) {
    %c0_i32 = arith.constant 0 : i32
    %c0_i32_0 = arith.constant 0 : i32
    %c0_i32_1 = arith.constant 0 : i32
    return %c0_i32, %c0_i32_0 : i32, i32
  }
  func.func @transform_11(%arg0: i32) -> (i32, i32) {
    %c0_i32 = arith.constant 0 : i32
    %c0_i32_0 = arith.constant 0 : i32
    %c0_i32_1 = arith.constant 0 : i32
    return %c0_i32, %c0_i32_0 : i32, i32
  }
  func.func @transform_12(%arg0: i32) -> (i32, i32) {
    %c0_i32 = arith.constant 0 : i32
    %c0_i32_0 = arith.constant 0 : i32
    return %arg0, %c0_i32 : i32, i32
  }
}

</mosaic_0001>

<llo_original>
// kernel: cross_attention_pallas.1
$region0: #{cross_attention_pallas.1}
  #allocation0 [shape = 'u32[]', space=smem, size = 0x4, offset = 0x4, fixed_abs, tag = 'smem constant byte address 0x4 - core index']
  #allocation1 [shape = 'u32[144,128]{1,0:T(1,128)}', space=vmem, size = 0x12000, scoped, tag = 'internal scratch']
  %s0 = inlined_call_operand.vmem [shape: f32[16,48], index: 0, kind: input, shape index: {}]
  %s1 = inlined_call_operand.vmem [shape: f32[16,4], index: 1, kind: input, shape index: {}]
  %s2 = inlined_call_operand.vmem [shape: f32[32,48], index: 2, kind: input, shape index: {}]
  %s3 = inlined_call_operand.vmem [shape: f32[32,4], index: 3, kind: input, shape index: {}]
  %s4 = inlined_call_operand.vmem [shape: f32[48,256], index: 4, kind: input, shape index: {}]
  %s5 = inlined_call_operand.vmem [shape: f32[4,256], index: 5, kind: input, shape index: {}]
  %s6 = inlined_call_operand.vmem [shape: f32[1,256], index: 6, kind: input, shape index: {}]
  %s7 = inlined_call_operand.vmem [shape: f32[48,512], index: 7, kind: input, shape index: {}]
  %s8 = inlined_call_operand.vmem [shape: f32[4,512], index: 8, kind: input, shape index: {}]
  %s9 = inlined_call_operand.vmem [shape: f32[1,512], index: 9, kind: input, shape index: {}]
  %s10 = inlined_call_operand.vmem [shape: f32[256,128], index: 10, kind: input, shape index: {}]
  %s11 = inlined_call_operand.vmem [shape: f32[1,128], index: 11, kind: input, shape index: {}]
  %s12 = inlined_call_operand.vmem [shape: f32[16,128], index: 12, kind: output, shape index: {}]
  %s13 = sld [smem:[#allocation0]]
  $region58: #{cross_attention_pallas.1} parent=0
    _
  %s15 = ssub.s32 1, %s13
  %s16 = scalar_select 0, %s15, %s13
  // Predicated region
  $region2: #{cross_attention_pallas.1} parent=0 // pred_check
    _
  $region3: #{cross_attention_pallas.1} parent=0 // pred_check_branch
    %18 = sbr.rel (0) target = $region5
  $region4: #{cross_attention_pallas.1} parent=0 // pred_region
    _
  $region5: #{cross_attention_pallas.1} parent=0 // pred_fallthru
    _
  // Predicated region
  $region6: #{cross_attention_pallas.1} parent=0 // pred_check
    _
  $region7: #{cross_attention_pallas.1} parent=0 // pred_check_branch
    %20 = sbr.rel (0) target = $region9
  $region8: #{cross_attention_pallas.1} parent=0 // pred_region
    _
  $region9: #{cross_attention_pallas.1} parent=0 // pred_fallthru
    _
  // Predicated region
  $region10: #{cross_attention_pallas.1} parent=0 // pred_check
    _
  $region11: #{cross_attention_pallas.1} parent=0 // pred_check_branch
    %22 = sbr.rel (0) target = $region13
  $region12: #{cross_attention_pallas.1} parent=0 // pred_region
    _
  $region13: #{cross_attention_pallas.1} parent=0 // pred_fallthru
    _
  // Predicated region
  $region14: #{cross_attention_pallas.1} parent=0 // pred_check
    _
  $region15: #{cross_attention_pallas.1} parent=0 // pred_check_branch
    %24 = sbr.rel (0) target = $region17
  $region16: #{cross_attention_pallas.1} parent=0 // pred_region
    _
  $region17: #{cross_attention_pallas.1} parent=0 // pred_fallthru
    _
  // Predicated region
  $region18: #{cross_attention_pallas.1} parent=0 // pred_check
    _
  $region19: #{cross_attention_pallas.1} parent=0 // pred_check_branch
    %26 = sbr.rel (0) target = $region21
  $region20: #{cross_attention_pallas.1} parent=0 // pred_region
    _
  $region21: #{cross_attention_pallas.1} parent=0 // pred_fallthru
    _
  // Predicated region
  $region22: #{cross_attention_pallas.1} parent=0 // pred_check
    _
  $region23: #{cross_attention_pallas.1} parent=0 // pred_check_branch
    %28 = sbr.rel (0) target = $region25
  $region24: #{cross_attention_pallas.1} parent=0 // pred_region
    _
  $region25: #{cross_attention_pallas.1} parent=0 // pred_fallthru
    _
  // Predicated region
  $region26: #{cross_attention_pallas.1} parent=0 // pred_check
    _
  $region27: #{cross_attention_pallas.1} parent=0 // pred_check_branch
    %30 = sbr.rel (0) target = $region29
  $region28: #{cross_attention_pallas.1} parent=0 // pred_region
    _
  $region29: #{cross_attention_pallas.1} parent=0 // pred_fallthru
    _
  // Predicated region
  $region30: #{cross_attention_pallas.1} parent=0 // pred_check
    _
  $region31: #{cross_attention_pallas.1} parent=0 // pred_check_branch
    %32 = sbr.rel (0) target = $region33
  $region32: #{cross_attention_pallas.1} parent=0 // pred_region
    _
  $region33: #{cross_attention_pallas.1} parent=0 // pred_fallthru
    _
  // Predicated region
  $region34: #{cross_attention_pallas.1} parent=0 // pred_check
    _
  $region35: #{cross_attention_pallas.1} parent=0 // pred_check_branch
    %34 = sbr.rel (0) target = $region37
  $region36: #{cross_attention_pallas.1} parent=0 // pred_region
    _
  $region37: #{cross_attention_pallas.1} parent=0 // pred_fallthru
    _
  // Predicated region
  $region38: #{cross_attention_pallas.1} parent=0 // pred_check
    _
  $region39: #{cross_attention_pallas.1} parent=0 // pred_check_branch
    %36 = sbr.rel (0) target = $region41
  $region40: #{cross_attention_pallas.1} parent=0 // pred_region
    _
  $region41: #{cross_attention_pallas.1} parent=0 // pred_fallthru
    _
  // Predicated region
  $region42: #{cross_attention_pallas.1} parent=0 // pred_check
    _
  $region43: #{cross_attention_pallas.1} parent=0 // pred_check_branch
    %38 = sbr.rel (0) target = $region45
  $region44: #{cross_attention_pallas.1} parent=0 // pred_region
    _
  $region45: #{cross_attention_pallas.1} parent=0 // pred_fallthru
    _
  // Predicated region
  $region46: #{cross_attention_pallas.1} parent=0 // pred_check
    _
  $region47: #{cross_attention_pallas.1} parent=0 // pred_check_branch
    %40 = sbr.rel (0) target = $region49
  $region48: #{cross_attention_pallas.1} parent=0 // pred_region
    _
  $region49: #{cross_attention_pallas.1} parent=0 // pred_fallthru
    _
  %v41 = vld [vmem:[%s0] sm:$0xff]
  %v42 = vld [vmem:[%s0 + $0x8] sm:$0xff]
  %v43 = vld [vmem:[%s4] sm:$0xff]
  %v44 = vld [vmem:[%s4 + $0x8] sm:$0xff]
  %v45 = vld [vmem:[%s4 + $0x10] sm:$0xff]
  %v46 = vld [vmem:[%s4 + $0x18] sm:$0xff]
  %v47 = vld [vmem:[%s4 + $0x20] sm:$0xff]
  %v48 = vld [vmem:[%s4 + $0x28] sm:$0xff]
  %v49 = vld [vmem:[%s4 + $0x30] sm:$0xff]
  %v50 = vld [vmem:[%s4 + $0x38] sm:$0xff]
  %v51 = vld [vmem:[%s4 + $0x40] sm:$0xff]
  %v52 = vld [vmem:[%s4 + $0x48] sm:$0xff]
  %v53 = vld [vmem:[%s4 + $0x50] sm:$0xff]
  %v54 = vld [vmem:[%s4 + $0x58] sm:$0xff]
  %v55 = vld [vmem:[%s1] sm:$0xff]
  %v56 = vld [vmem:[%s1 + $0x8] sm:$0xff]
  %v57 = vld [vmem:[%s5] sm:$0xff]
  %v59 = vcombine.high %v57, %v57
  %vm60 = vcmask 31744
  %v62 = vsel %vm60, %v55, 0
  %v65 = vsel %vm60, %v56, 0
  %vm67 = vcmask 1043456
  %v68 = vsel %vm67, %v57, 0
  %v70 = vsel %vm67, %v59, 0
  %72 = vmatprep.subr.mxu0 0.0
  %73 = vmatpush1.msra.mxu0 0.0
  %74 = vmatprep.subr.mxu0 0.0
  %75 = vmatpush1.msra.mxu0 0.0
  %76 = vmatprep.subr.mxu0 0.0
  %77 = vmatpush1.msra.mxu0 0.0
  %78 = vmatprep.subr.mxu0 0.0
  %79 = vmatpush1.msra.mxu0 0.0
  %80 = vmatprep.subr.mxu0 0.0
  %81 = vmatpush1.msra.mxu0 0.0
  %82 = vmatprep.subr.mxu0 0.0
  %83 = vmatpush1.msra.mxu0 0.0
  %84 = vmatprep.subr.mxu0 0.0
  %85 = vmatpush1.msra.mxu0 0.0
  %86 = vmatprep.subr.mxu0 0.0
  %87 = vmatpush1.msra.mxu0 0.0
  %88 = vmatprep.subr.mxu0 0.0
  %89 = vmatpush1.msra.mxu0 0.0
  %90 = vmatprep.subr.mxu0 0.0
  %91 = vmatpush1.msra.mxu0 0.0
  %92 = vmatprep.subr.mxu0 0.0
  %93 = vmatpush1.msra.mxu0 0.0
  %94 = vmatprep.subr.mxu0 0.0
  %95 = vmatpush1.msra.mxu0 0.0
  %96 = vmatprep.subr.mxu0 0.0
  %97 = vmatpush1.msra.mxu0 0.0
  %98 = vmatprep.subr.mxu0 0.0
  %99 = vmatpush1.msra.mxu0 0.0
  %100 = vmatprep.subr.mxu0 0.0
  %101 = vmatpush1.msra.mxu0 0.0
  %102 = vmatprep.subr.mxu0 %v70
  %103 = vmatpush1.msra.mxu0 %v68
  %104 = vmatprep.subr.mxu0 0.0
  %105 = vmatpush2.msra.mxu0 0.0
  %106 = vmatprep.subr.mxu0 0.0
  %107 = vmatpush2.msra.mxu0 0.0
  %108 = vmatprep.subr.mxu0 0.0
  %109 = vmatpush2.msra.mxu0 0.0
  %110 = vmatprep.subr.mxu0 0.0
  %111 = vmatpush2.msra.mxu0 0.0
  %112 = vmatprep.subr.mxu0 0.0
  %113 = vmatpush2.msra.mxu0 0.0
  %114 = vmatprep.subr.mxu0 0.0
  %115 = vmatpush2.msra.mxu0 0.0
  %116 = vmatprep.subr.mxu0 0.0
  %117 = vmatpush2.msra.mxu0 0.0
  %118 = vmatprep.subr.mxu0 0.0
  %119 = vmatpush2.msra.mxu0 0.0
  %120 = vmatprep.subr.mxu0 0.0
  %121 = vmatpush2.msra.mxu0 0.0
  %122 = vmatprep.subr.mxu0 0.0
  %123 = vmatpush2.msra.mxu0 0.0
  %124 = vmatprep.subr.mxu0 0.0
  %125 = vmatpush2.msra.mxu0 0.0
  %126 = vmatprep.subr.mxu0 0.0
  %127 = vmatpush2.msra.mxu0 0.0
  %128 = vmatprep.subr.mxu0 0.0
  %129 = vmatpush2.msra.mxu0 0.0
  %130 = vmatprep.subr.mxu0 0.0
  %131 = vmatpush2.msra.mxu0 0.0
  %132 = vmatprep.subr.mxu0 0.0
  %133 = vmatpush2.msra.mxu0 0.0
  %134 = vmatprep.subr.mxu0 0.0
  %135 = vmatpush2.msra.mxu0 0.0
  %136 = vmatprep.mubr.f32.mxu0 0.0
  %137 = vmatmul.mubr.f32.gmra.mxu0 %v62
  %v138 = vpop.f32.mrf.mxu0
  %v139 = vadd.f32 0.0, %v138
  %v140 = vpop.f32.mrf.mxu0
  %v141 = vadd.f32 0.0, %v140
  %142 = vmatprep.mubr.f32.mxu0 0.0
  %143 = vmatmul.mubr.f32.gmra.mxu0 %v65
  %v144 = vpop.f32.mrf.mxu0
  %v145 = vadd.f32 0.0, %v144
  %v146 = vpop.f32.mrf.mxu0
  %v147 = vadd.f32 0.0, %v146
  %148 = vdwg.mxu0
  %vm149 = vcmask 392192
  %v151 = vsel %vm149, %v41, 0
  %v154 = vsel %vm149, %v42, 0
  %156 = vmatprep.subr.mxu0 0.0
  %157 = vmatpush1.msra.mxu0 0.0
  %158 = vmatprep.subr.mxu0 0.0
  %159 = vmatpush1.msra.mxu0 0.0
  %160 = vmatprep.subr.mxu0 0.0
  %161 = vmatpush1.msra.mxu0 0.0
  %162 = vmatprep.subr.mxu0 0.0
  %163 = vmatpush1.msra.mxu0 0.0
  %164 = vmatprep.subr.mxu0 0.0
  %165 = vmatpush1.msra.mxu0 0.0
  %166 = vmatprep.subr.mxu0 0.0
  %167 = vmatpush1.msra.mxu0 0.0
  %168 = vmatprep.subr.mxu0 0.0
  %169 = vmatpush1.msra.mxu0 0.0
  %170 = vmatprep.subr.mxu0 0.0
  %171 = vmatpush1.msra.mxu0 0.0
  %172 = vmatprep.subr.mxu0 0.0
  %173 = vmatpush1.msra.mxu0 0.0
  %174 = vmatprep.subr.mxu0 0.0
  %175 = vmatpush1.msra.mxu0 0.0
  %176 = vmatprep.subr.mxu0 %v54
  %177 = vmatpush1.msra.mxu0 %v53
  %178 = vmatprep.subr.mxu0 %v52
  %179 = vmatpush1.msra.mxu0 %v51
  %180 = vmatprep.subr.mxu0 %v50
  %181 = vmatpush1.msra.mxu0 %v49
  %182 = vmatprep.subr.mxu0 %v48
  %183 = vmatpush1.msra.mxu0 %v47
  %184 = vmatprep.subr.mxu0 %v46
  %185 = vmatpush1.msra.mxu0 %v45
  %186 = vmatprep.subr.mxu0 %v44
  %187 = vmatpush1.msra.mxu0 %v43
  %188 = vmatprep.subr.mxu0 0.0
  %189 = vmatpush2.msra.mxu0 0.0
  %190 = vmatprep.subr.mxu0 0.0
  %191 = vmatpush2.msra.mxu0 0.0
  %192 = vmatprep.subr.mxu0 0.0
  %193 = vmatpush2.msra.mxu0 0.0
  %194 = vmatprep.subr.mxu0 0.0
  %195 = vmatpush2.msra.mxu0 0.0
  %196 = vmatprep.subr.mxu0 0.0
  %197 = vmatpush2.msra.mxu0 0.0
  %198 = vmatprep.subr.mxu0 0.0
  %199 = vmatpush2.msra.mxu0 0.0
  %200 = vmatprep.subr.mxu0 0.0
  %201 = vmatpush2.msra.mxu0 0.0
  %202 = vmatprep.subr.mxu0 0.0
  %203 = vmatpush2.msra.mxu0 0.0
  %204 = vmatprep.subr.mxu0 0.0
  %205 = vmatpush2.msra.mxu0 0.0
  %206 = vmatprep.subr.mxu0 0.0
  %207 = vmatpush2.msra.mxu0 0.0
  %208 = vmatprep.subr.mxu0 0.0
  %209 = vmatpush2.msra.mxu0 0.0
  %210 = vmatprep.subr.mxu0 0.0
  %211 = vmatpush2.msra.mxu0 0.0
  %212 = vmatprep.subr.mxu0 0.0
  %213 = vmatpush2.msra.mxu0 0.0
  %214 = vmatprep.subr.mxu0 0.0
  %215 = vmatpush2.msra.mxu0 0.0
  %216 = vmatprep.subr.mxu0 0.0
  %217 = vmatpush2.msra.mxu0 0.0
  %218 = vmatprep.subr.mxu0 0.0
  %219 = vmatpush2.msra.mxu0 0.0
  %220 = vmatprep.mubr.f32.mxu0 0.0
  %221 = vmatmul.mubr.f32.gmra.mxu0 %v151
  %v222 = vpop.f32.mrf.mxu0
  %v223 = vadd.f32 %v139, %v222
  %v224 = vpop.f32.mrf.mxu0
  %v225 = vadd.f32 %v141, %v224
  %226 = vmatprep.mubr.f32.mxu0 0.0
  %227 = vmatmul.mubr.f32.gmra.mxu0 %v154
  %v228 = vpop.f32.mrf.mxu0
  %v229 = vadd.f32 %v145, %v228
  %v230 = vpop.f32.mrf.mxu0
  %v231 = vadd.f32 %v147, %v230
  %232 = vdwg.mxu0
  %v233 = vld [vmem:[%s6] sm:$0x3]
  %v235 = vlaneseq
  %v236 = vshrl.u32 %v235, 7
  %v237 = vsub.s32 0, %v236
  %v238 = vrot.slane %v233, %v237
  %v239 = vlaneseq
  %v240 = vshrl.u32 %v239, 7
  %v241 = vsub.s32 1, %v240
  %v242 = vrot.slane %v233, %v241
  %v245 = vadd.f32 %v223, %v238
  %v246 = vadd.f32 %v225, %v242
  %v247 = vadd.f32 %v229, %v238
  %v248 = vadd.f32 %v231, %v242
  %v249 = vld [vmem:[%s2] sm:$0xff]
  %v250 = vld [vmem:[%s2 + $0x8] sm:$0xff]
  %v251 = vld [vmem:[%s2 + $0x10] sm:$0xff]
  %v252 = vld [vmem:[%s2 + $0x18] sm:$0xff]
  %v253 = vld [vmem:[%s7] sm:$0xff]
  %v254 = vld [vmem:[%s7 + $0x8] sm:$0xff]
  %v255 = vld [vmem:[%s7 + $0x10] sm:$0xff]
  %v256 = vld [vmem:[%s7 + $0x18] sm:$0xff]
  %v257 = vld [vmem:[%s7 + $0x20] sm:$0xff]
  %v258 = vld [vmem:[%s7 + $0x28] sm:$0xff]
  %v259 = vld [vmem:[%s7 + $0x30] sm:$0xff]
  %v260 = vld [vmem:[%s7 + $0x38] sm:$0xff]
  %v261 = vld [vmem:[%s7 + $0x40] sm:$0xff]
  %v262 = vld [vmem:[%s7 + $0x48] sm:$0xff]
  %v263 = vld [vmem:[%s7 + $0x50] sm:$0xff]
  %v264 = vld [vmem:[%s7 + $0x58] sm:$0xff]
  %v265 = vld [vmem:[%s7 + $0x60] sm:$0xff]
  %v266 = vld [vmem:[%s7 + $0x68] sm:$0xff]
  %v267 = vld [vmem:[%s7 + $0x70] sm:$0xff]
  %v268 = vld [vmem:[%s7 + $0x78] sm:$0xff]
  %v269 = vld [vmem:[%s7 + $0x80] sm:$0xff]
  %v270 = vld [vmem:[%s7 + $0x88] sm:$0xff]
  %v271 = vld [vmem:[%s7 + $0x90] sm:$0xff]
  %v272 = vld [vmem:[%s7 + $0x98] sm:$0xff]
  %v273 = vld [vmem:[%s7 + $0xa0] sm:$0xff]
  %v274 = vld [vmem:[%s7 + $0xa8] sm:$0xff]
  %v275 = vld [vmem:[%s7 + $0xb0] sm:$0xff]
  %v276 = vld [vmem:[%s7 + $0xb8] sm:$0xff]
  %v277 = vld [vmem:[%s3] sm:$0xff]
  %v278 = vld [vmem:[%s3 + $0x8] sm:$0xff]
  %v279 = vld [vmem:[%s3 + $0x10] sm:$0xff]
  %v280 = vld [vmem:[%s3 + $0x18] sm:$0xff]
  %v281 = vld [vmem:[%s8] sm:$0xff]
  %v282 = vld [vmem:[%s8 + $0x8] sm:$0xff]
  %v285 = vcombine.high %v281, %v281
  %v286 = vcombine.high %v282, %v282
  %v288 = vsel %vm60, %v277, 0
  %v291 = vsel %vm60, %v278, 0
  %v294 = vsel %vm60, %v279, 0
  %v297 = vsel %vm60, %v280, 0
  %v299 = vsel %vm67, %v281, 0
  %v301 = vsel %vm67, %v285, 0
  %v303 = vsel %vm67, %v282, 0
  %v305 = vsel %vm67, %v286, 0
  %307 = vmatprep.subr.mxu0 0.0
  %308 = vmatpush1.msra.mxu0 0.0
  %309 = vmatprep.subr.mxu0 0.0
  %310 = vmatpush1.msra.mxu0 0.0
  %311 = vmatprep.subr.mxu0 0.0
  %312 = vmatpush1.msra.mxu0 0.0
  %313 = vmatprep.subr.mxu0 0.0
  %314 = vmatpush1.msra.mxu0 0.0
  %315 = vmatprep.subr.mxu0 0.0
  %316 = vmatpush1.msra.mxu0 0.0
  %317 = vmatprep.subr.mxu0 0.0
  %318 = vmatpush1.msra.mxu0 0.0
  %319 = vmatprep.subr.mxu0 0.0
  %320 = vmatpush1.msra.mxu0 0.0
  %321 = vmatprep.subr.mxu0 0.0
  %322 = vmatpush1.msra.mxu0 0.0
  %323 = vmatprep.subr.mxu0 0.0
  %324 = vmatpush1.msra.mxu0 0.0
  %325 = vmatprep.subr.mxu0 0.0
  %326 = vmatpush1.msra.mxu0 0.0
  %327 = vmatprep.subr.mxu0 0.0
  %328 = vmatpush1.msra.mxu0 0.0
  %329 = vmatprep.subr.mxu0 0.0
  %330 = vmatpush1.msra.mxu0 0.0
  %331 = vmatprep.subr.mxu0 0.0
  %332 = vmatpush1.msra.mxu0 0.0
  %333 = vmatprep.subr.mxu0 0.0
  %334 = vmatpush1.msra.mxu0 0.0
  %335 = vmatprep.subr.mxu0 0.0
  %336 = vmatpush1.msra.mxu0 0.0
  %337 = vmatprep.subr.mxu0 %v301
  %338 = vmatpush1.msra.mxu0 %v299
  %339 = vmatprep.subr.mxu0 0.0
  %340 = vmatpush2.msra.mxu0 0.0
  %341 = vmatprep.subr.mxu0 0.0
  %342 = vmatpush2.msra.mxu0 0.0
  %343 = vmatprep.subr.mxu0 0.0
  %344 = vmatpush2.msra.mxu0 0.0
  %345 = vmatprep.subr.mxu0 0.0
  %346 = vmatpush2.msra.mxu0 0.0
  %347 = vmatprep.subr.mxu0 0.0
  %348 = vmatpush2.msra.mxu0 0.0
  %349 = vmatprep.subr.mxu0 0.0
  %350 = vmatpush2.msra.mxu0 0.0
  %351 = vmatprep.subr.mxu0 0.0
  %352 = vmatpush2.msra.mxu0 0.0
  %353 = vmatprep.subr.mxu0 0.0
  %354 = vmatpush2.msra.mxu0 0.0
  %355 = vmatprep.subr.mxu0 0.0
  %356 = vmatpush2.msra.mxu0 0.0
  %357 = vmatprep.subr.mxu0 0.0
  %358 = vmatpush2.msra.mxu0 0.0
  %359 = vmatprep.subr.mxu0 0.0
  %360 = vmatpush2.msra.mxu0 0.0
  %361 = vmatprep.subr.mxu0 0.0
  %362 = vmatpush2.msra.mxu0 0.0
  %363 = vmatprep.subr.mxu0 0.0
  %364 = vmatpush2.msra.mxu0 0.0
  %365 = vmatprep.subr.mxu0 0.0
  %366 = vmatpush2.msra.mxu0 0.0
  %367 = vmatprep.subr.mxu0 0.0
  %368 = vmatpush2.msra.mxu0 0.0
  %369 = vmatprep.subr.mxu0 0.0
  %370 = vmatpush2.msra.mxu0 0.0
  %371 = vmatprep.mubr.f32.mxu0 0.0
  %372 = vmatmul.mubr.f32.gmra.mxu0 %v288
  %v373 = vpop.f32.mrf.mxu0
  %v374 = vadd.f32 0.0, %v373
  %v375 = vpop.f32.mrf.mxu0
  %v376 = vadd.f32 0.0, %v375
  %377 = vmatprep.mubr.f32.mxu0 0.0
  %378 = vmatmul.mubr.f32.gmra.mxu0 %v291
  %v379 = vpop.f32.mrf.mxu0
  %v380 = vadd.f32 0.0, %v379
  %v381 = vpop.f32.mrf.mxu0
  %v382 = vadd.f32 0.0, %v381
  %383 = vmatprep.mubr.f32.mxu0 0.0
  %384 = vmatmul.mubr.f32.gmra.mxu0 %v294
  %v385 = vpop.f32.mrf.mxu0
  %v386 = vadd.f32 0.0, %v385
  %v387 = vpop.f32.mrf.mxu0
  %v388 = vadd.f32 0.0, %v387
  %389 = vmatprep.mubr.f32.mxu0 0.0
  %390 = vmatmul.mubr.f32.gmra.mxu0 %v297
  %v391 = vpop.f32.mrf.mxu0
  %v392 = vadd.f32 0.0, %v391
  %v393 = vpop.f32.mrf.mxu0
  %v394 = vadd.f32 0.0, %v393
  %395 = vdwg.mxu0
  %396 = vmatprep.subr.mxu0 0.0
  %397 = vmatpush1.msra.mxu0 0.0
  %398 = vmatprep.subr.mxu0 0.0
  %399 = vmatpush1.msra.mxu0 0.0
  %400 = vmatprep.subr.mxu0 0.0
  %401 = vmatpush1.msra.mxu0 0.0
  %402 = vmatprep.subr.mxu0 0.0
  %403 = vmatpush1.msra.mxu0 0.0
  %404 = vmatprep.subr.mxu0 0.0
  %405 = vmatpush1.msra.mxu0 0.0
  %406 = vmatprep.subr.mxu0 0.0
  %407 = vmatpush1.msra.mxu0 0.0
  %408 = vmatprep.subr.mxu0 0.0
  %409 = vmatpush1.msra.mxu0 0.0
  %410 = vmatprep.subr.mxu0 0.0
  %411 = vmatpush1.msra.mxu0 0.0
  %412 = vmatprep.subr.mxu0 0.0
  %413 = vmatpush1.msra.mxu0 0.0
  %414 = vmatprep.subr.mxu0 0.0
  %415 = vmatpush1.msra.mxu0 0.0
  %416 = vmatprep.subr.mxu0 0.0
  %417 = vmatpush1.msra.mxu0 0.0
  %418 = vmatprep.subr.mxu0 0.0
  %419 = vmatpush1.msra.mxu0 0.0
  %420 = vmatprep.subr.mxu0 0.0
  %421 = vmatpush1.msra.mxu0 0.0
  %422 = vmatprep.subr.mxu0 0.0
  %423 = vmatpush1.msra.mxu0 0.0
  %424 = vmatprep.subr.mxu0 0.0
  %425 = vmatpush1.msra.mxu0 0.0
  %426 = vmatprep.subr.mxu0 %v305
  %427 = vmatpush1.msra.mxu0 %v303
  %428 = vmatprep.subr.mxu0 0.0
  %429 = vmatpush2.msra.mxu0 0.0
  %430 = vmatprep.subr.mxu0 0.0
  %431 = vmatpush2.msra.mxu0 0.0
  %432 = vmatprep.subr.mxu0 0.0
  %433 = vmatpush2.msra.mxu0 0.0
  %434 = vmatprep.subr.mxu0 0.0
  %435 = vmatpush2.msra.mxu0 0.0
  %436 = vmatprep.subr.mxu0 0.0
  %437 = vmatpush2.msra.mxu0 0.0
  %438 = vmatprep.subr.mxu0 0.0
  %439 = vmatpush2.msra.mxu0 0.0
  %440 = vmatprep.subr.mxu0 0.0
  %441 = vmatpush2.msra.mxu0 0.0
  %442 = vmatprep.subr.mxu0 0.0
  %443 = vmatpush2.msra.mxu0 0.0
  %444 = vmatprep.subr.mxu0 0.0
  %445 = vmatpush2.msra.mxu0 0.0
  %446 = vmatprep.subr.mxu0 0.0
  %447 = vmatpush2.msra.mxu0 0.0
  %448 = vmatprep.subr.mxu0 0.0
  %449 = vmatpush2.msra.mxu0 0.0
  %450 = vmatprep.subr.mxu0 0.0
  %451 = vmatpush2.msra.mxu0 0.0
  %452 = vmatprep.subr.mxu0 0.0
  %453 = vmatpush2.msra.mxu0 0.0
  %454 = vmatprep.subr.mxu0 0.0
  %455 = vmatpush2.msra.mxu0 0.0
  %456 = vmatprep.subr.mxu0 0.0
  %457 = vmatpush2.msra.mxu0 0.0
  %458 = vmatprep.subr.mxu0 0.0
  %459 = vmatpush2.msra.mxu0 0.0
  %460 = vmatprep.mubr.f32.mxu0 0.0
  %461 = vmatmul.mubr.f32.gmra.mxu0 %v288
  %v462 = vpop.f32.mrf.mxu0
  %v463 = vadd.f32 0.0, %v462
  %v464 = vpop.f32.mrf.mxu0
  %v465 = vadd.f32 0.0, %v464
  %466 = vmatprep.mubr.f32.mxu0 0.0
  %467 = vmatmul.mubr.f32.gmra.mxu0 %v291
  %v468 = vpop.f32.mrf.mxu0
  %v469 = vadd.f32 0.0, %v468
  %v470 = vpop.f32.mrf.mxu0
  %v471 = vadd.f32 0.0, %v470
  %472 = vmatprep.mubr.f32.mxu0 0.0
  %473 = vmatmul.mubr.f32.gmra.mxu0 %v294
  %v474 = vpop.f32.mrf.mxu0
  %v475 = vadd.f32 0.0, %v474
  %v476 = vpop.f32.mrf.mxu0
  %v477 = vadd.f32 0.0, %v476
  %478 = vmatprep.mubr.f32.mxu0 0.0
  %479 = vmatmul.mubr.f32.gmra.mxu0 %v297
  %v480 = vpop.f32.mrf.mxu0
  %v481 = vadd.f32 0.0, %v480
  %v482 = vpop.f32.mrf.mxu0
  %v483 = vadd.f32 0.0, %v482
  %484 = vdwg.mxu0
  %v486 = vsel %vm149, %v249, 0
  %v489 = vsel %vm149, %v250, 0
  %v492 = vsel %vm149, %v251, 0
  %v495 = vsel %vm149, %v252, 0
  %497 = vmatprep.subr.mxu0 0.0
  %498 = vmatpush1.msra.mxu0 0.0
  %499 = vmatprep.subr.mxu0 0.0
  %500 = vmatpush1.msra.mxu0 0.0
  %501 = vmatprep.subr.mxu0 0.0
  %502 = vmatpush1.msra.mxu0 0.0
  %503 = vmatprep.subr.mxu0 0.0
  %504 = vmatpush1.msra.mxu0 0.0
  %505 = vmatprep.subr.mxu0 0.0
  %506 = vmatpush1.msra.mxu0 0.0
  %507 = vmatprep.subr.mxu0 0.0
  %508 = vmatpush1.msra.mxu0 0.0
  %509 = vmatprep.subr.mxu0 0.0
  %510 = vmatpush1.msra.mxu0 0.0
  %511 = vmatprep.subr.mxu0 0.0
  %512 = vmatpush1.msra.mxu0 0.0
  %513 = vmatprep.subr.mxu0 0.0
  %514 = vmatpush1.msra.mxu0 0.0
  %515 = vmatprep.subr.mxu0 0.0
  %516 = vmatpush1.msra.mxu0 0.0
  %517 = vmatprep.subr.mxu0 %v274
  %518 = vmatpush1.msra.mxu0 %v273
  %519 = vmatprep.subr.mxu0 %v270
  %520 = vmatpush1.msra.mxu0 %v269
  %521 = vmatprep.subr.mxu0 %v266
  %522 = vmatpush1.msra.mxu0 %v265
  %523 = vmatprep.subr.mxu0 %v262
  %524 = vmatpush1.msra.mxu0 %v261
  %525 = vmatprep.subr.mxu0 %v258
  %526 = vmatpush1.msra.mxu0 %v257
  %527 = vmatprep.subr.mxu0 %v254
  %528 = vmatpush1.msra.mxu0 %v253
  %529 = vmatprep.subr.mxu0 0.0
  %530 = vmatpush2.msra.mxu0 0.0
  %531 = vmatprep.subr.mxu0 0.0
  %532 = vmatpush2.msra.mxu0 0.0
  %533 = vmatprep.subr.mxu0 0.0
  %534 = vmatpush2.msra.mxu0 0.0
  %535 = vmatprep.subr.mxu0 0.0
  %536 = vmatpush2.msra.mxu0 0.0
  %537 = vmatprep.subr.mxu0 0.0
  %538 = vmatpush2.msra.mxu0 0.0
  %539 = vmatprep.subr.mxu0 0.0
  %540 = vmatpush2.msra.mxu0 0.0
  %541 = vmatprep.subr.mxu0 0.0
  %542 = vmatpush2.msra.mxu0 0.0
  %543 = vmatprep.subr.mxu0 0.0
  %544 = vmatpush2.msra.mxu0 0.0
  %545 = vmatprep.subr.mxu0 0.0
  %546 = vmatpush2.msra.mxu0 0.0
  %547 = vmatprep.subr.mxu0 0.0
  %548 = vmatpush2.msra.mxu0 0.0
  %549 = vmatprep.subr.mxu0 0.0
  %550 = vmatpush2.msra.mxu0 0.0
  %551 = vmatprep.subr.mxu0 0.0
  %552 = vmatpush2.msra.mxu0 0.0
  %553 = vmatprep.subr.mxu0 0.0
  %554 = vmatpush2.msra.mxu0 0.0
  %555 = vmatprep.subr.mxu0 0.0
  %556 = vmatpush2.msra.mxu0 0.0
  %557 = vmatprep.subr.mxu0 0.0
  %558 = vmatpush2.msra.mxu0 0.0
  %559 = vmatprep.subr.mxu0 0.0
  %560 = vmatpush2.msra.mxu0 0.0
  %561 = vmatprep.mubr.f32.mxu0 0.0
  %562 = vmatmul.mubr.f32.gmra.mxu0 %v486
  %v563 = vpop.f32.mrf.mxu0
  %v564 = vadd.f32 %v374, %v563
  %v565 = vpop.f32.mrf.mxu0
  %v566 = vadd.f32 %v376, %v565
  %567 = vmatprep.mubr.f32.mxu0 0.0
  %568 = vmatmul.mubr.f32.gmra.mxu0 %v489
  %v569 = vpop.f32.mrf.mxu0
  %v570 = vadd.f32 %v380, %v569
  %v571 = vpop.f32.mrf.mxu0
  %v572 = vadd.f32 %v382, %v571
  %573 = vmatprep.mubr.f32.mxu0 0.0
  %574 = vmatmul.mubr.f32.gmra.mxu0 %v492
  %v575 = vpop.f32.mrf.mxu0
  %v576 = vadd.f32 %v386, %v575
  %v577 = vpop.f32.mrf.mxu0
  %v578 = vadd.f32 %v388, %v577
  %579 = vmatprep.mubr.f32.mxu0 0.0
  %580 = vmatmul.mubr.f32.gmra.mxu0 %v495
  %v581 = vpop.f32.mrf.mxu0
  %v582 = vadd.f32 %v392, %v581
  %v583 = vpop.f32.mrf.mxu0
  %v584 = vadd.f32 %v394, %v583
  %585 = vdwg.mxu0
  %586 = vmatprep.subr.mxu0 0.0
  %587 = vmatpush1.msra.mxu0 0.0
  %588 = vmatprep.subr.mxu0 0.0
  %589 = vmatpush1.msra.mxu0 0.0
  %590 = vmatprep.subr.mxu0 0.0
  %591 = vmatpush1.msra.mxu0 0.0
  %592 = vmatprep.subr.mxu0 0.0
  %593 = vmatpush1.msra.mxu0 0.0
  %594 = vmatprep.subr.mxu0 0.0
  %595 = vmatpush1.msra.mxu0 0.0
  %596 = vmatprep.subr.mxu0 0.0
  %597 = vmatpush1.msra.mxu0 0.0
  %598 = vmatprep.subr.mxu0 0.0
  %599 = vmatpush1.msra.mxu0 0.0
  %600 = vmatprep.subr.mxu0 0.0
  %601 = vmatpush1.msra.mxu0 0.0
  %602 = vmatprep.subr.mxu0 0.0
  %603 = vmatpush1.msra.mxu0 0.0
  %604 = vmatprep.subr.mxu0 0.0
  %605 = vmatpush1.msra.mxu0 0.0
  %606 = vmatprep.subr.mxu0 %v276
  %607 = vmatpush1.msra.mxu0 %v275
  %608 = vmatprep.subr.mxu0 %v272
  %609 = vmatpush1.msra.mxu0 %v271
  %610 = vmatprep.subr.mxu0 %v268
  %611 = vmatpush1.msra.mxu0 %v267
  %612 = vmatprep.subr.mxu0 %v264
  %613 = vmatpush1.msra.mxu0 %v263
  %614 = vmatprep.subr.mxu0 %v260
  %615 = vmatpush1.msra.mxu0 %v259
  %616 = vmatprep.subr.mxu0 %v256
  %617 = vmatpush1.msra.mxu0 %v255
  %618 = vmatprep.subr.mxu0 0.0
  %619 = vmatpush2.msra.mxu0 0.0
  %620 = vmatprep.subr.mxu0 0.0
  %621 = vmatpush2.msra.mxu0 0.0
  %622 = vmatprep.subr.mxu0 0.0
  %623 = vmatpush2.msra.mxu0 0.0
  %624 = vmatprep.subr.mxu0 0.0
  %625 = vmatpush2.msra.mxu0 0.0
  %626 = vmatprep.subr.mxu0 0.0
  %627 = vmatpush2.msra.mxu0 0.0
  %628 = vmatprep.subr.mxu0 0.0
  %629 = vmatpush2.msra.mxu0 0.0
  %630 = vmatprep.subr.mxu0 0.0
  %631 = vmatpush2.msra.mxu0 0.0
  %632 = vmatprep.subr.mxu0 0.0
  %633 = vmatpush2.msra.mxu0 0.0
  %634 = vmatprep.subr.mxu0 0.0
  %635 = vmatpush2.msra.mxu0 0.0
  %636 = vmatprep.subr.mxu0 0.0
  %637 = vmatpush2.msra.mxu0 0.0
  %638 = vmatprep.subr.mxu0 0.0
  %639 = vmatpush2.msra.mxu0 0.0
  %640 = vmatprep.subr.mxu0 0.0
  %641 = vmatpush2.msra.mxu0 0.0
  %642 = vmatprep.subr.mxu0 0.0
  %643 = vmatpush2.msra.mxu0 0.0
  %644 = vmatprep.subr.mxu0 0.0
  %645 = vmatpush2.msra.mxu0 0.0
  %646 = vmatprep.subr.mxu0 0.0
  %647 = vmatpush2.msra.mxu0 0.0
  %648 = vmatprep.subr.mxu0 0.0
  %649 = vmatpush2.msra.mxu0 0.0
  %650 = vmatprep.mubr.f32.mxu0 0.0
  %651 = vmatmul.mubr.f32.gmra.mxu0 %v486
  %v652 = vpop.f32.mrf.mxu0
  %v653 = vadd.f32 %v463, %v652
  %v654 = vpop.f32.mrf.mxu0
  %v655 = vadd.f32 %v465, %v654
  %656 = vmatprep.mubr.f32.mxu0 0.0
  %657 = vmatmul.mubr.f32.gmra.mxu0 %v489
  %v658 = vpop.f32.mrf.mxu0
  %v659 = vadd.f32 %v469, %v658
  %v660 = vpop.f32.mrf.mxu0
  %v661 = vadd.f32 %v471, %v660
  %662 = vmatprep.mubr.f32.mxu0 0.0
  %663 = vmatmul.mubr.f32.gmra.mxu0 %v492
  %v664 = vpop.f32.mrf.mxu0
  %v665 = vadd.f32 %v475, %v664
  %v666 = vpop.f32.mrf.mxu0
  %v667 = vadd.f32 %v477, %v666
  %668 = vmatprep.mubr.f32.mxu0 0.0
  %669 = vmatmul.mubr.f32.gmra.mxu0 %v495
  %v670 = vpop.f32.mrf.mxu0
  %v671 = vadd.f32 %v481, %v670
  %v672 = vpop.f32.mrf.mxu0
  %v673 = vadd.f32 %v483, %v672
  %674 = vdwg.mxu0
  %v675 = vld [vmem:[%s9] sm:$0xf]
  %v677 = vlaneseq
  %v678 = vshrl.u32 %v677, 7
  %v679 = vsub.s32 0, %v678
  %v680 = vrot.slane %v675, %v679
  %v681 = vlaneseq
  %v682 = vshrl.u32 %v681, 7
  %v683 = vsub.s32 1, %v682
  %v684 = vrot.slane %v675, %v683
  %v685 = vlaneseq
  %v686 = vshrl.u32 %v685, 7
  %v687 = vsub.s32 2, %v686
  %v688 = vrot.slane %v675, %v687
  %v689 = vlaneseq
  %v690 = vshrl.u32 %v689, 7
  %v691 = vsub.s32 3, %v690
  %v692 = vrot.slane %v675, %v691
  %v697 = vadd.f32 %v564, %v680
  %v698 = vadd.f32 %v566, %v684
  %v699 = vadd.f32 %v653, %v688
  %v700 = vadd.f32 %v655, %v692
  %v701 = vadd.f32 %v570, %v680
  %v702 = vadd.f32 %v572, %v684
  %v703 = vadd.f32 %v659, %v688
  %v704 = vadd.f32 %v661, %v692
  %v705 = vadd.f32 %v576, %v680
  %v706 = vadd.f32 %v578, %v684
  %v707 = vadd.f32 %v665, %v688
  %v708 = vadd.f32 %v667, %v692
  %v709 = vadd.f32 %v582, %v680
  %v710 = vadd.f32 %v584, %v684
  %v711 = vadd.f32 %v671, %v688
  %v712 = vadd.f32 %v673, %v692
  %v713 = vld [vmem:[%s11] sm:$0x1]
  %714 = vmatprep.subr.mxu0 0.0
  %715 = vmatpush1.xpose.msra.mxu0 0.0
  %716 = vmatprep.subr.mxu0 0.0
  %717 = vmatpush1.xpose.msra.mxu0 0.0
  %718 = vmatprep.subr.mxu0 0.0
  %719 = vmatpush1.xpose.msra.mxu0 0.0
  %720 = vmatprep.subr.mxu0 0.0
  %721 = vmatpush1.xpose.msra.mxu0 0.0
  %722 = vmatprep.subr.mxu0 0.0
  %723 = vmatpush1.xpose.msra.mxu0 0.0
  %724 = vmatprep.subr.mxu0 0.0
  %725 = vmatpush1.xpose.msra.mxu0 0.0
  %726 = vmatprep.subr.mxu0 0.0
  %727 = vmatpush1.xpose.msra.mxu0 0.0
  %728 = vmatprep.subr.mxu0 0.0
  %729 = vmatpush1.xpose.msra.mxu0 0.0
  %730 = vmatprep.subr.mxu0 0.0
  %731 = vmatpush1.xpose.msra.mxu0 0.0
  %732 = vmatprep.subr.mxu0 0.0
  %733 = vmatpush1.xpose.msra.mxu0 0.0
  %734 = vmatprep.subr.mxu0 0.0
  %735 = vmatpush1.xpose.msra.mxu0 0.0
  %736 = vmatprep.subr.mxu0 0.0
  %737 = vmatpush1.xpose.msra.mxu0 0.0
  %738 = vmatprep.subr.mxu0 0.0
  %739 = vmatpush1.xpose.msra.mxu0 0.0
  %740 = vmatprep.subr.mxu0 0.0
  %741 = vmatpush1.xpose.msra.mxu0 0.0
  %742 = vmatprep.subr.mxu0 0.0
  %743 = vmatpush1.xpose.msra.mxu0 %v701
  %744 = vmatprep.subr.mxu0 0.0
  %745 = vmatpush1.xpose.msra.mxu0 %v697
  %746 = vmatprep.subr.mxu0 0.0
  %747 = vmatpush2.xpose.msra.mxu0 0.0
  %748 = vmatprep.subr.mxu0 0.0
  %749 = vmatpush2.xpose.msra.mxu0 0.0
  %750 = vmatprep.subr.mxu0 0.0
  %751 = vmatpush2.xpose.msra.mxu0 0.0
  %752 = vmatprep.subr.mxu0 0.0
  %753 = vmatpush2.xpose.msra.mxu0 0.0
  %754 = vmatprep.subr.mxu0 0.0
  %755 = vmatpush2.xpose.msra.mxu0 0.0
  %756 = vmatprep.subr.mxu0 0.0
  %757 = vmatpush2.xpose.msra.mxu0 0.0
  %758 = vmatprep.subr.mxu0 0.0
  %759 = vmatpush2.xpose.msra.mxu0 0.0
  %760 = vmatprep.subr.mxu0 0.0
  %761 = vmatpush2.xpose.msra.mxu0 0.0
  %762 = vmatprep.subr.mxu0 0.0
  %763 = vmatpush2.xpose.msra.mxu0 0.0
  %764 = vmatprep.subr.mxu0 0.0
  %765 = vmatpush2.xpose.msra.mxu0 0.0
  %766 = vmatprep.subr.mxu0 0.0
  %767 = vmatpush2.xpose.msra.mxu0 0.0
  %768 = vmatprep.subr.mxu0 0.0
  %769 = vmatpush2.xpose.msra.mxu0 0.0
  %770 = vmatprep.subr.mxu0 0.0
  %771 = vmatpush2.xpose.msra.mxu0 0.0
  %772 = vmatprep.subr.mxu0 0.0
  %773 = vmatpush2.xpose.msra.mxu0 0.0
  %774 = vmatprep.subr.mxu0 0.0
  %775 = vmatpush2.xpose.msra.mxu0 0.0
  %776 = vmatprep.subr.mxu0 0.0
  %777 = vmatpush2.xpose.msra.mxu0 0.0
  %778 = vmatprep.mubr.f32.mxu0 0.0
  %779 = vmatmul.mubr.f32.gmra.mxu0 %v245
  %v780 = vpop.f32.mrf.mxu0
  %v781 = vadd.f32 0.0, %v780
  %v782 = vpop.f32.mrf.mxu0
  %783 = vdwg.mxu0
  %vm784 = vcmask 130048
  %v785 = vsel %vm784, %v781, -inf
  %786 = vmax.xlane.f32.xlu0 %v785
  %v787 = vpop.xlane.xlu0 %786
  %v788 = vsub.f32 %v781, %v787
  %v789 = vmul.f32 %v788, 1.442695
  %v790 = vpow.pop %v789
  %v791 = vsel %vm784, %v790, 0.0
  %792 = vadd.xlane.f32.xlu0 %v791
  %v793 = vpop.xlane.xlu0 %792
  %v794 = vrcp.pop %v793
  %v795 = vmul.f32 1.0, %v794
  %v796 = vmul.f32 %v790, %v795
  %v798 = vsel %vm784, %v796, 0
  %800 = vmatprep.subr.mxu0 0.0
  %801 = vmatpush1.msra.mxu0 0.0
  %802 = vmatprep.subr.mxu0 0.0
  %803 = vmatpush1.msra.mxu0 0.0
  %804 = vmatprep.subr.mxu0 0.0
  %805 = vmatpush1.msra.mxu0 0.0
  %806 = vmatprep.subr.mxu0 0.0
  %807 = vmatpush1.msra.mxu0 0.0
  %808 = vmatprep.subr.mxu0 0.0
  %809 = vmatpush1.msra.mxu0 0.0
  %810 = vmatprep.subr.mxu0 0.0
  %811 = vmatpush1.msra.mxu0 0.0
  %812 = vmatprep.subr.mxu0 0.0
  %813 = vmatpush1.msra.mxu0 0.0
  %814 = vmatprep.subr.mxu0 0.0
  %815 = vmatpush1.msra.mxu0 0.0
  %816 = vmatprep.subr.mxu0 0.0
  %817 = vmatpush1.msra.mxu0 0.0
  %818 = vmatprep.subr.mxu0 0.0
  %819 = vmatpush1.msra.mxu0 0.0
  %820 = vmatprep.subr.mxu0 0.0
  %821 = vmatpush1.msra.mxu0 0.0
  %822 = vmatprep.subr.mxu0 0.0
  %823 = vmatpush1.msra.mxu0 0.0
  %824 = vmatprep.subr.mxu0 0.0
  %825 = vmatpush1.msra.mxu0 0.0
  %826 = vmatprep.subr.mxu0 0.0
  %827 = vmatpush1.msra.mxu0 0.0
  %828 = vmatprep.subr.mxu0 0.0
  %829 = vmatpush1.msra.mxu0 %v703
  %830 = vmatprep.subr.mxu0 0.0
  %831 = vmatpush1.msra.mxu0 %v699
  %832 = vmatprep.subr.mxu0 0.0
  %833 = vmatpush2.msra.mxu0 0.0
  %834 = vmatprep.subr.mxu0 0.0
  %835 = vmatpush2.msra.mxu0 0.0
  %836 = vmatprep.subr.mxu0 0.0
  %837 = vmatpush2.msra.mxu0 0.0
  %838 = vmatprep.subr.mxu0 0.0
  %839 = vmatpush2.msra.mxu0 0.0
  %840 = vmatprep.subr.mxu0 0.0
  %841 = vmatpush2.msra.mxu0 0.0
  %842 = vmatprep.subr.mxu0 0.0
  %843 = vmatpush2.msra.mxu0 0.0
  %844 = vmatprep.subr.mxu0 0.0
  %845 = vmatpush2.msra.mxu0 0.0
  %846 = vmatprep.subr.mxu0 0.0
  %847 = vmatpush2.msra.mxu0 0.0
  %848 = vmatprep.subr.mxu0 0.0
  %849 = vmatpush2.msra.mxu0 0.0
  %850 = vmatprep.subr.mxu0 0.0
  %851 = vmatpush2.msra.mxu0 0.0
  %852 = vmatprep.subr.mxu0 0.0
  %853 = vmatpush2.msra.mxu0 0.0
  %854 = vmatprep.subr.mxu0 0.0
  %855 = vmatpush2.msra.mxu0 0.0
  %856 = vmatprep.subr.mxu0 0.0
  %857 = vmatpush2.msra.mxu0 0.0
  %858 = vmatprep.subr.mxu0 0.0
  %859 = vmatpush2.msra.mxu0 0.0
  %860 = vmatprep.subr.mxu0 0.0
  %861 = vmatpush2.msra.mxu0 0.0
  %862 = vmatprep.subr.mxu0 0.0
  %863 = vmatpush2.msra.mxu0 0.0
  %864 = vmatprep.mubr.f32.mxu0 0.0
  %865 = vmatmul.mubr.f32.gmra.mxu0 %v798
  %v866 = vpop.f32.mrf.mxu0
  %v867 = vadd.f32 0.0, %v866
  %v868 = vpop.f32.mrf.mxu0
  %869 = vdwg.mxu0
  %v870 = vld [vmem:[%s10] sm:$0xff]
  %v871 = vld [vmem:[%s10 + $0x8] sm:$0xff]
  %v872 = vld [vmem:[%s10 + $0x10] sm:$0xff]
  %v873 = vld [vmem:[%s10 + $0x18] sm:$0xff]
  %v874 = vld [vmem:[%s10 + $0x20] sm:$0xff]
  %v875 = vld [vmem:[%s10 + $0x28] sm:$0xff]
  %v876 = vld [vmem:[%s10 + $0x30] sm:$0xff]
  %v877 = vld [vmem:[%s10 + $0x38] sm:$0xff]
  %v878 = vld [vmem:[%s10 + $0x40] sm:$0xff]
  %v879 = vld [vmem:[%s10 + $0x48] sm:$0xff]
  %v880 = vld [vmem:[%s10 + $0x50] sm:$0xff]
  %v881 = vld [vmem:[%s10 + $0x58] sm:$0xff]
  %v882 = vld [vmem:[%s10 + $0x60] sm:$0xff]
  %v883 = vld [vmem:[%s10 + $0x68] sm:$0xff]
  %v884 = vld [vmem:[%s10 + $0x70] sm:$0xff]
  %v885 = vld [vmem:[%s10 + $0x78] sm:$0xff]
  %886 = vmatprep.subr.mxu0 0.0
  %887 = vmatpush1.xpose.msra.mxu0 0.0
  %888 = vmatprep.subr.mxu0 0.0
  %889 = vmatpush1.xpose.msra.mxu0 0.0
  %890 = vmatprep.subr.mxu0 0.0
  %891 = vmatpush1.xpose.msra.mxu0 0.0
  %892 = vmatprep.subr.mxu0 0.0
  %893 = vmatpush1.xpose.msra.mxu0 0.0
  %894 = vmatprep.subr.mxu0 0.0
  %895 = vmatpush1.xpose.msra.mxu0 0.0
  %896 = vmatprep.subr.mxu0 0.0
  %897 = vmatpush1.xpose.msra.mxu0 0.0
  %898 = vmatprep.subr.mxu0 0.0
  %899 = vmatpush1.xpose.msra.mxu0 0.0
  %900 = vmatprep.subr.mxu0 0.0
  %901 = vmatpush1.xpose.msra.mxu0 0.0
  %902 = vmatprep.subr.mxu0 0.0
  %903 = vmatpush1.xpose.msra.mxu0 0.0
  %904 = vmatprep.subr.mxu0 0.0
  %905 = vmatpush1.xpose.msra.mxu0 0.0
  %906 = vmatprep.subr.mxu0 0.0
  %907 = vmatpush1.xpose.msra.mxu0 0.0
  %908 = vmatprep.subr.mxu0 0.0
  %909 = vmatpush1.xpose.msra.mxu0 0.0
  %910 = vmatprep.subr.mxu0 0.0
  %911 = vmatpush1.xpose.msra.mxu0 0.0
  %912 = vmatprep.subr.mxu0 0.0
  %913 = vmatpush1.xpose.msra.mxu0 0.0
  %914 = vmatprep.subr.mxu0 0.0
  %915 = vmatpush1.xpose.msra.mxu0 %v702
  %916 = vmatprep.subr.mxu0 0.0
  %917 = vmatpush1.xpose.msra.mxu0 %v698
  %918 = vmatprep.subr.mxu0 0.0
  %919 = vmatpush2.xpose.msra.mxu0 0.0
  %920 = vmatprep.subr.mxu0 0.0
  %921 = vmatpush2.xpose.msra.mxu0 0.0
  %922 = vmatprep.subr.mxu0 0.0
  %923 = vmatpush2.xpose.msra.mxu0 0.0
  %924 = vmatprep.subr.mxu0 0.0
  %925 = vmatpush2.xpose.msra.mxu0 0.0
  %926 = vmatprep.subr.mxu0 0.0
  %927 = vmatpush2.xpose.msra.mxu0 0.0
  %928 = vmatprep.subr.mxu0 0.0
  %929 = vmatpush2.xpose.msra.mxu0 0.0
  %930 = vmatprep.subr.mxu0 0.0
  %931 = vmatpush2.xpose.msra.mxu0 0.0
  %932 = vmatprep.subr.mxu0 0.0
  %933 = vmatpush2.xpose.msra.mxu0 0.0
  %934 = vmatprep.subr.mxu0 0.0
  %935 = vmatpush2.xpose.msra.mxu0 0.0
  %936 = vmatprep.subr.mxu0 0.0
  %937 = vmatpush2.xpose.msra.mxu0 0.0
  %938 = vmatprep.subr.mxu0 0.0
  %939 = vmatpush2.xpose.msra.mxu0 0.0
  %940 = vmatprep.subr.mxu0 0.0
  %941 = vmatpush2.xpose.msra.mxu0 0.0
  %942 = vmatprep.subr.mxu0 0.0
  %943 = vmatpush2.xpose.msra.mxu0 0.0
  %944 = vmatprep.subr.mxu0 0.0
  %945 = vmatpush2.xpose.msra.mxu0 0.0
  %946 = vmatprep.subr.mxu0 0.0
  %947 = vmatpush2.xpose.msra.mxu0 0.0
  %948 = vmatprep.subr.mxu0 0.0
  %949 = vmatpush2.xpose.msra.mxu0 0.0
  %950 = vmatprep.mubr.f32.mxu0 0.0
  %951 = vmatmul.mubr.f32.gmra.mxu0 %v246
  %v952 = vpop.f32.mrf.mxu0
  %v953 = vadd.f32 0.0, %v952
  %v954 = vpop.f32.mrf.mxu0
  %955 = vdwg.mxu0
  %v956 = vsel %vm784, %v953, -inf
  %957 = vmax.xlane.f32.xlu0 %v956
  %v958 = vpop.xlane.xlu0 %957
  %v959 = vsub.f32 %v953, %v958
  %v960 = vmul.f32 %v959, 1.442695
  %v961 = vpow.pop %v960
  %v962 = vsel %vm784, %v961, 0.0
  %963 = vadd.xlane.f32.xlu0 %v962
  %v964 = vpop.xlane.xlu0 %963
  %v965 = vrcp.pop %v964
  %v966 = vmul.f32 1.0, %v965
  %v967 = vmul.f32 %v961, %v966
  %v969 = vsel %vm784, %v967, 0
  %971 = vmatprep.subr.mxu0 0.0
  %972 = vmatpush1.msra.mxu0 0.0
  %973 = vmatprep.subr.mxu0 0.0
  %974 = vmatpush1.msra.mxu0 0.0
  %975 = vmatprep.subr.mxu0 0.0
  %976 = vmatpush1.msra.mxu0 0.0
  %977 = vmatprep.subr.mxu0 0.0
  %978 = vmatpush1.msra.mxu0 0.0
  %979 = vmatprep.subr.mxu0 0.0
  %980 = vmatpush1.msra.mxu0 0.0
  %981 = vmatprep.subr.mxu0 0.0
  %982 = vmatpush1.msra.mxu0 0.0
  %983 = vmatprep.subr.mxu0 0.0
  %984 = vmatpush1.msra.mxu0 0.0
  %985 = vmatprep.subr.mxu0 0.0
  %986 = vmatpush1.msra.mxu0 0.0
  %987 = vmatprep.subr.mxu0 0.0
  %988 = vmatpush1.msra.mxu0 0.0
  %989 = vmatprep.subr.mxu0 0.0
  %990 = vmatpush1.msra.mxu0 0.0
  %991 = vmatprep.subr.mxu0 0.0
  %992 = vmatpush1.msra.mxu0 0.0
  %993 = vmatprep.subr.mxu0 0.0
  %994 = vmatpush1.msra.mxu0 0.0
  %995 = vmatprep.subr.mxu0 0.0
  %996 = vmatpush1.msra.mxu0 0.0
  %997 = vmatprep.subr.mxu0 0.0
  %998 = vmatpush1.msra.mxu0 0.0
  %999 = vmatprep.subr.mxu0 0.0
  %1000 = vmatpush1.msra.mxu0 %v704
  %1001 = vmatprep.subr.mxu0 0.0
  %1002 = vmatpush1.msra.mxu0 %v700
  %1003 = vmatprep.subr.mxu0 0.0
  %1004 = vmatpush2.msra.mxu0 0.0
  %1005 = vmatprep.subr.mxu0 0.0
  %1006 = vmatpush2.msra.mxu0 0.0
  %1007 = vmatprep.subr.mxu0 0.0
  %1008 = vmatpush2.msra.mxu0 0.0
  %1009 = vmatprep.subr.mxu0 0.0
  %1010 = vmatpush2.msra.mxu0 0.0
  %1011 = vmatprep.subr.mxu0 0.0
  %1012 = vmatpush2.msra.mxu0 0.0
  %1013 = vmatprep.subr.mxu0 0.0
  %1014 = vmatpush2.msra.mxu0 0.0
  %1015 = vmatprep.subr.mxu0 0.0
  %1016 = vmatpush2.msra.mxu0 0.0
  %1017 = vmatprep.subr.mxu0 0.0
  %1018 = vmatpush2.msra.mxu0 0.0
  %1019 = vmatprep.subr.mxu0 0.0
  %1020 = vmatpush2.msra.mxu0 0.0
  %1021 = vmatprep.subr.mxu0 0.0
  %1022 = vmatpush2.msra.mxu0 0.0
  %1023 = vmatprep.subr.mxu0 0.0
  %1024 = vmatpush2.msra.mxu0 0.0
  %1025 = vmatprep.subr.mxu0 0.0
  %1026 = vmatpush2.msra.mxu0 0.0
  %1027 = vmatprep.subr.mxu0 0.0
  %1028 = vmatpush2.msra.mxu0 0.0
  %1029 = vmatprep.subr.mxu0 0.0
  %1030 = vmatpush2.msra.mxu0 0.0
  %1031 = vmatprep.subr.mxu0 0.0
  %1032 = vmatpush2.msra.mxu0 0.0
  %1033 = vmatprep.subr.mxu0 0.0
  %1034 = vmatpush2.msra.mxu0 0.0
  %1035 = vmatprep.mubr.f32.mxu0 0.0
  %1036 = vmatmul.mubr.f32.gmra.mxu0 %v969
  %v1037 = vpop.f32.mrf.mxu0
  %v1038 = vadd.f32 0.0, %v1037
  %v1039 = vpop.f32.mrf.mxu0
  %1040 = vdwg.mxu0
  %v1041 = vld [vmem:[%s10 + $0x80] sm:$0xff]
  %v1042 = vld [vmem:[%s10 + $0x88] sm:$0xff]
  %v1043 = vld [vmem:[%s10 + $0x90] sm:$0xff]
  %v1044 = vld [vmem:[%s10 + $0x98] sm:$0xff]
  %v1045 = vld [vmem:[%s10 + $0xa0] sm:$0xff]
  %v1046 = vld [vmem:[%s10 + $0xa8] sm:$0xff]
  %v1047 = vld [vmem:[%s10 + $0xb0] sm:$0xff]
  %v1048 = vld [vmem:[%s10 + $0xb8] sm:$0xff]
  %v1049 = vld [vmem:[%s10 + $0xc0] sm:$0xff]
  %v1050 = vld [vmem:[%s10 + $0xc8] sm:$0xff]
  %v1051 = vld [vmem:[%s10 + $0xd0] sm:$0xff]
  %v1052 = vld [vmem:[%s10 + $0xd8] sm:$0xff]
  %v1053 = vld [vmem:[%s10 + $0xe0] sm:$0xff]
  %v1054 = vld [vmem:[%s10 + $0xe8] sm:$0xff]
  %v1055 = vld [vmem:[%s10 + $0xf0] sm:$0xff]
  %v1056 = vld [vmem:[%s10 + $0xf8] sm:$0xff]
  %1057 = vmatprep.subr.mxu0 0.0
  %1058 = vmatpush1.msra.mxu0 %v1056
  %1059 = vmatprep.subr.mxu0 0.0
  %1060 = vmatpush1.msra.mxu0 %v1055
  %1061 = vmatprep.subr.mxu0 0.0
  %1062 = vmatpush1.msra.mxu0 %v1054
  %1063 = vmatprep.subr.mxu0 0.0
  %1064 = vmatpush1.msra.mxu0 %v1053
  %1065 = vmatprep.subr.mxu0 0.0
  %1066 = vmatpush1.msra.mxu0 %v1052
  %1067 = vmatprep.subr.mxu0 0.0
  %1068 = vmatpush1.msra.mxu0 %v1051
  %1069 = vmatprep.subr.mxu0 0.0
  %1070 = vmatpush1.msra.mxu0 %v1050
  %1071 = vmatprep.subr.mxu0 0.0
  %1072 = vmatpush1.msra.mxu0 %v1049
  %1073 = vmatprep.subr.mxu0 0.0
  %1074 = vmatpush1.msra.mxu0 %v1048
  %1075 = vmatprep.subr.mxu0 0.0
  %1076 = vmatpush1.msra.mxu0 %v1047
  %1077 = vmatprep.subr.mxu0 0.0
  %1078 = vmatpush1.msra.mxu0 %v1046
  %1079 = vmatprep.subr.mxu0 0.0
  %1080 = vmatpush1.msra.mxu0 %v1045
  %1081 = vmatprep.subr.mxu0 0.0
  %1082 = vmatpush1.msra.mxu0 %v1044
  %1083 = vmatprep.subr.mxu0 0.0
  %1084 = vmatpush1.msra.mxu0 %v1043
  %1085 = vmatprep.subr.mxu0 0.0
  %1086 = vmatpush1.msra.mxu0 %v1042
  %1087 = vmatprep.subr.mxu0 0.0
  %1088 = vmatpush1.msra.mxu0 %v1041
  %1089 = vmatprep.subr.mxu0 0.0
  %1090 = vmatpush2.msra.mxu0 0.0
  %1091 = vmatprep.subr.mxu0 0.0
  %1092 = vmatpush2.msra.mxu0 0.0
  %1093 = vmatprep.subr.mxu0 0.0
  %1094 = vmatpush2.msra.mxu0 0.0
  %1095 = vmatprep.subr.mxu0 0.0
  %1096 = vmatpush2.msra.mxu0 0.0
  %1097 = vmatprep.subr.mxu0 0.0
  %1098 = vmatpush2.msra.mxu0 0.0
  %1099 = vmatprep.subr.mxu0 0.0
  %1100 = vmatpush2.msra.mxu0 0.0
  %1101 = vmatprep.subr.mxu0 0.0
  %1102 = vmatpush2.msra.mxu0 0.0
  %1103 = vmatprep.subr.mxu0 0.0
  %1104 = vmatpush2.msra.mxu0 0.0
  %1105 = vmatprep.subr.mxu0 0.0
  %1106 = vmatpush2.msra.mxu0 0.0
  %1107 = vmatprep.subr.mxu0 0.0
  %1108 = vmatpush2.msra.mxu0 0.0
  %1109 = vmatprep.subr.mxu0 0.0
  %1110 = vmatpush2.msra.mxu0 0.0
  %1111 = vmatprep.subr.mxu0 0.0
  %1112 = vmatpush2.msra.mxu0 0.0
  %1113 = vmatprep.subr.mxu0 0.0
  %1114 = vmatpush2.msra.mxu0 0.0
  %1115 = vmatprep.subr.mxu0 0.0
  %1116 = vmatpush2.msra.mxu0 0.0
  %1117 = vmatprep.subr.mxu0 0.0
  %1118 = vmatpush2.msra.mxu0 0.0
  %1119 = vmatprep.subr.mxu0 0.0
  %1120 = vmatpush2.msra.mxu0 0.0
  %1121 = vmatprep.mubr.f32.mxu0 0.0
  %1122 = vmatmul.mubr.f32.gmra.mxu0 %v1038
  %v1123 = vpop.f32.mrf.mxu0
  %v1124 = vadd.f32 0.0, %v1123
  %v1125 = vpop.f32.mrf.mxu0
  %1126 = vdwg.mxu0
  %1127 = vmatprep.subr.mxu0 0.0
  %1128 = vmatpush1.msra.mxu0 %v885
  %1129 = vmatprep.subr.mxu0 0.0
  %1130 = vmatpush1.msra.mxu0 %v884
  %1131 = vmatprep.subr.mxu0 0.0
  %1132 = vmatpush1.msra.mxu0 %v883
  %1133 = vmatprep.subr.mxu0 0.0
  %1134 = vmatpush1.msra.mxu0 %v882
  %1135 = vmatprep.subr.mxu0 0.0
  %1136 = vmatpush1.msra.mxu0 %v881
  %1137 = vmatprep.subr.mxu0 0.0
  %1138 = vmatpush1.msra.mxu0 %v880
  %1139 = vmatprep.subr.mxu0 0.0
  %1140 = vmatpush1.msra.mxu0 %v879
  %1141 = vmatprep.subr.mxu0 0.0
  %1142 = vmatpush1.msra.mxu0 %v878
  %1143 = vmatprep.subr.mxu0 0.0
  %1144 = vmatpush1.msra.mxu0 %v877
  %1145 = vmatprep.subr.mxu0 0.0
  %1146 = vmatpush1.msra.mxu0 %v876
  %1147 = vmatprep.subr.mxu0 0.0
  %1148 = vmatpush1.msra.mxu0 %v875
  %1149 = vmatprep.subr.mxu0 0.0
  %1150 = vmatpush1.msra.mxu0 %v874
  %1151 = vmatprep.subr.mxu0 0.0
  %1152 = vmatpush1.msra.mxu0 %v873
  %1153 = vmatprep.subr.mxu0 0.0
  %1154 = vmatpush1.msra.mxu0 %v872
  %1155 = vmatprep.subr.mxu0 0.0
  %1156 = vmatpush1.msra.mxu0 %v871
  %1157 = vmatprep.subr.mxu0 0.0
  %1158 = vmatpush1.msra.mxu0 %v870
  %1159 = vmatprep.subr.mxu0 0.0
  %1160 = vmatpush2.msra.mxu0 0.0
  %1161 = vmatprep.subr.mxu0 0.0
  %1162 = vmatpush2.msra.mxu0 0.0
  %1163 = vmatprep.subr.mxu0 0.0
  %1164 = vmatpush2.msra.mxu0 0.0
  %1165 = vmatprep.subr.mxu0 0.0
  %1166 = vmatpush2.msra.mxu0 0.0
  %1167 = vmatprep.subr.mxu0 0.0
  %1168 = vmatpush2.msra.mxu0 0.0
  %1169 = vmatprep.subr.mxu0 0.0
  %1170 = vmatpush2.msra.mxu0 0.0
  %1171 = vmatprep.subr.mxu0 0.0
  %1172 = vmatpush2.msra.mxu0 0.0
  %1173 = vmatprep.subr.mxu0 0.0
  %1174 = vmatpush2.msra.mxu0 0.0
  %1175 = vmatprep.subr.mxu0 0.0
  %1176 = vmatpush2.msra.mxu0 0.0
  %1177 = vmatprep.subr.mxu0 0.0
  %1178 = vmatpush2.msra.mxu0 0.0
  %1179 = vmatprep.subr.mxu0 0.0
  %1180 = vmatpush2.msra.mxu0 0.0
  %1181 = vmatprep.subr.mxu0 0.0
  %1182 = vmatpush2.msra.mxu0 0.0
  %1183 = vmatprep.subr.mxu0 0.0
  %1184 = vmatpush2.msra.mxu0 0.0
  %1185 = vmatprep.subr.mxu0 0.0
  %1186 = vmatpush2.msra.mxu0 0.0
  %1187 = vmatprep.subr.mxu0 0.0
  %1188 = vmatpush2.msra.mxu0 0.0
  %1189 = vmatprep.subr.mxu0 0.0
  %1190 = vmatpush2.msra.mxu0 0.0
  %1191 = vmatprep.mubr.f32.mxu0 0.0
  %1192 = vmatmul.mubr.f32.gmra.mxu0 %v867
  %v1193 = vpop.f32.mrf.mxu0
  %v1194 = vadd.f32 %v1124, %v1193
  %v1195 = vpop.f32.mrf.mxu0
  %1196 = vdwg.mxu0
  %v1198 = vlaneseq
  %v1199 = vshrl.u32 %v1198, 7
  %v1200 = vsub.s32 0, %v1199
  %v1201 = vrot.slane %v713, %v1200
  %v1203 = vadd.f32 %v1194, %v1201
  %1204 = vst [vmem:[%s12] sm:$0xff] %v1203
  %1205 = vmatprep.subr.mxu0 0.0
  %1206 = vmatpush1.xpose.msra.mxu0 0.0
  %1207 = vmatprep.subr.mxu0 0.0
  %1208 = vmatpush1.xpose.msra.mxu0 0.0
  %1209 = vmatprep.subr.mxu0 0.0
  %1210 = vmatpush1.xpose.msra.mxu0 0.0
  %1211 = vmatprep.subr.mxu0 0.0
  %1212 = vmatpush1.xpose.msra.mxu0 0.0
  %1213 = vmatprep.subr.mxu0 0.0
  %1214 = vmatpush1.xpose.msra.mxu0 0.0
  %1215 = vmatprep.subr.mxu0 0.0
  %1216 = vmatpush1.xpose.msra.mxu0 0.0
  %1217 = vmatprep.subr.mxu0 0.0
  %1218 = vmatpush1.xpose.msra.mxu0 0.0
  %1219 = vmatprep.subr.mxu0 0.0
  %1220 = vmatpush1.xpose.msra.mxu0 0.0
  %1221 = vmatprep.subr.mxu0 0.0
  %1222 = vmatpush1.xpose.msra.mxu0 0.0
  %1223 = vmatprep.subr.mxu0 0.0
  %1224 = vmatpush1.xpose.msra.mxu0 0.0
  %1225 = vmatprep.subr.mxu0 0.0
  %1226 = vmatpush1.xpose.msra.mxu0 0.0
  %1227 = vmatprep.subr.mxu0 0.0
  %1228 = vmatpush1.xpose.msra.mxu0 0.0
  %1229 = vmatprep.subr.mxu0 0.0
  %1230 = vmatpush1.xpose.msra.mxu0 0.0
  %1231 = vmatprep.subr.mxu0 0.0
  %1232 = vmatpush1.xpose.msra.mxu0 0.0
  %1233 = vmatprep.subr.mxu0 0.0
  %1234 = vmatpush1.xpose.msra.mxu0 %v709
  %1235 = vmatprep.subr.mxu0 0.0
  %1236 = vmatpush1.xpose.msra.mxu0 %v705
  %1237 = vmatprep.subr.mxu0 0.0
  %1238 = vmatpush2.xpose.msra.mxu0 0.0
  %1239 = vmatprep.subr.mxu0 0.0
  %1240 = vmatpush2.xpose.msra.mxu0 0.0
  %1241 = vmatprep.subr.mxu0 0.0
  %1242 = vmatpush2.xpose.msra.mxu0 0.0
  %1243 = vmatprep.subr.mxu0 0.0
  %1244 = vmatpush2.xpose.msra.mxu0 0.0
  %1245 = vmatprep.subr.mxu0 0.0
  %1246 = vmatpush2.xpose.msra.mxu0 0.0
  %1247 = vmatprep.subr.mxu0 0.0
  %1248 = vmatpush2.xpose.msra.mxu0 0.0
  %1249 = vmatprep.subr.mxu0 0.0
  %1250 = vmatpush2.xpose.msra.mxu0 0.0
  %1251 = vmatprep.subr.mxu0 0.0
  %1252 = vmatpush2.xpose.msra.mxu0 0.0
  %1253 = vmatprep.subr.mxu0 0.0
  %1254 = vmatpush2.xpose.msra.mxu0 0.0
  %1255 = vmatprep.subr.mxu0 0.0
  %1256 = vmatpush2.xpose.msra.mxu0 0.0
  %1257 = vmatprep.subr.mxu0 0.0
  %1258 = vmatpush2.xpose.msra.mxu0 0.0
  %1259 = vmatprep.subr.mxu0 0.0
  %1260 = vmatpush2.xpose.msra.mxu0 0.0
  %1261 = vmatprep.subr.mxu0 0.0
  %1262 = vmatpush2.xpose.msra.mxu0 0.0
  %1263 = vmatprep.subr.mxu0 0.0
  %1264 = vmatpush2.xpose.msra.mxu0 0.0
  %1265 = vmatprep.subr.mxu0 0.0
  %1266 = vmatpush2.xpose.msra.mxu0 0.0
  %1267 = vmatprep.subr.mxu0 0.0
  %1268 = vmatpush2.xpose.msra.mxu0 0.0
  %1269 = vmatprep.mubr.f32.mxu0 0.0
  %1270 = vmatmul.mubr.f32.gmra.mxu0 %v247
  %v1271 = vpop.f32.mrf.mxu0
  %v1272 = vadd.f32 0.0, %v1271
  %v1273 = vpop.f32.mrf.mxu0
  %1274 = vdwg.mxu0
  %v1275 = vsel %vm784, %v1272, -inf
  %1276 = vmax.xlane.f32.xlu0 %v1275
  %v1277 = vpop.xlane.xlu0 %1276
  %v1278 = vsub.f32 %v1272, %v1277
  %v1279 = vmul.f32 %v1278, 1.442695
  %v1280 = vpow.pop %v1279
  %v1281 = vsel %vm784, %v1280, 0.0
  %1282 = vadd.xlane.f32.xlu0 %v1281
  %v1283 = vpop.xlane.xlu0 %1282
  %v1284 = vrcp.pop %v1283
  %v1285 = vmul.f32 1.0, %v1284
  %v1286 = vmul.f32 %v1280, %v1285
  %v1288 = vsel %vm784, %v1286, 0
  %1290 = vmatprep.subr.mxu0 0.0
  %1291 = vmatpush1.msra.mxu0 0.0
  %1292 = vmatprep.subr.mxu0 0.0
  %1293 = vmatpush1.msra.mxu0 0.0
  %1294 = vmatprep.subr.mxu0 0.0
  %1295 = vmatpush1.msra.mxu0 0.0
  %1296 = vmatprep.subr.mxu0 0.0
  %1297 = vmatpush1.msra.mxu0 0.0
  %1298 = vmatprep.subr.mxu0 0.0
  %1299 = vmatpush1.msra.mxu0 0.0
  %1300 = vmatprep.subr.mxu0 0.0
  %1301 = vmatpush1.msra.mxu0 0.0
  %1302 = vmatprep.subr.mxu0 0.0
  %1303 = vmatpush1.msra.mxu0 0.0
  %1304 = vmatprep.subr.mxu0 0.0
  %1305 = vmatpush1.msra.mxu0 0.0
  %1306 = vmatprep.subr.mxu0 0.0
  %1307 = vmatpush1.msra.mxu0 0.0
  %1308 = vmatprep.subr.mxu0 0.0
  %1309 = vmatpush1.msra.mxu0 0.0
  %1310 = vmatprep.subr.mxu0 0.0
  %1311 = vmatpush1.msra.mxu0 0.0
  %1312 = vmatprep.subr.mxu0 0.0
  %1313 = vmatpush1.msra.mxu0 0.0
  %1314 = vmatprep.subr.mxu0 0.0
  %1315 = vmatpush1.msra.mxu0 0.0
  %1316 = vmatprep.subr.mxu0 0.0
  %1317 = vmatpush1.msra.mxu0 0.0
  %1318 = vmatprep.subr.mxu0 0.0
  %1319 = vmatpush1.msra.mxu0 %v711
  %1320 = vmatprep.subr.mxu0 0.0
  %1321 = vmatpush1.msra.mxu0 %v707
  %1322 = vmatprep.subr.mxu0 0.0
  %1323 = vmatpush2.msra.mxu0 0.0
  %1324 = vmatprep.subr.mxu0 0.0
  %1325 = vmatpush2.msra.mxu0 0.0
  %1326 = vmatprep.subr.mxu0 0.0
  %1327 = vmatpush2.msra.mxu0 0.0
  %1328 = vmatprep.subr.mxu0 0.0
  %1329 = vmatpush2.msra.mxu0 0.0
  %1330 = vmatprep.subr.mxu0 0.0
  %1331 = vmatpush2.msra.mxu0 0.0
  %1332 = vmatprep.subr.mxu0 0.0
  %1333 = vmatpush2.msra.mxu0 0.0
  %1334 = vmatprep.subr.mxu0 0.0
  %1335 = vmatpush2.msra.mxu0 0.0
  %1336 = vmatprep.subr.mxu0 0.0
  %1337 = vmatpush2.msra.mxu0 0.0
  %1338 = vmatprep.subr.mxu0 0.0
  %1339 = vmatpush2.msra.mxu0 0.0
  %1340 = vmatprep.subr.mxu0 0.0
  %1341 = vmatpush2.msra.mxu0 0.0
  %1342 = vmatprep.subr.mxu0 0.0
  %1343 = vmatpush2.msra.mxu0 0.0
  %1344 = vmatprep.subr.mxu0 0.0
  %1345 = vmatpush2.msra.mxu0 0.0
  %1346 = vmatprep.subr.mxu0 0.0
  %1347 = vmatpush2.msra.mxu0 0.0
  %1348 = vmatprep.subr.mxu0 0.0
  %1349 = vmatpush2.msra.mxu0 0.0
  %1350 = vmatprep.subr.mxu0 0.0
  %1351 = vmatpush2.msra.mxu0 0.0
  %1352 = vmatprep.subr.mxu0 0.0
  %1353 = vmatpush2.msra.mxu0 0.0
  %1354 = vmatprep.mubr.f32.mxu0 0.0
  %1355 = vmatmul.mubr.f32.gmra.mxu0 %v1288
  %v1356 = vpop.f32.mrf.mxu0
  %v1357 = vadd.f32 0.0, %v1356
  %v1358 = vpop.f32.mrf.mxu0
  %1359 = vdwg.mxu0
  %v1360 = vld [vmem:[%s10] sm:$0xff]
  %v1361 = vld [vmem:[%s10 + $0x8] sm:$0xff]
  %v1362 = vld [vmem:[%s10 + $0x10] sm:$0xff]
  %v1363 = vld [vmem:[%s10 + $0x18] sm:$0xff]
  %v1364 = vld [vmem:[%s10 + $0x20] sm:$0xff]
  %v1365 = vld [vmem:[%s10 + $0x28] sm:$0xff]
  %v1366 = vld [vmem:[%s10 + $0x30] sm:$0xff]
  %v1367 = vld [vmem:[%s10 + $0x38] sm:$0xff]
  %v1368 = vld [vmem:[%s10 + $0x40] sm:$0xff]
  %v1369 = vld [vmem:[%s10 + $0x48] sm:$0xff]
  %v1370 = vld [vmem:[%s10 + $0x50] sm:$0xff]
  %v1371 = vld [vmem:[%s10 + $0x58] sm:$0xff]
  %v1372 = vld [vmem:[%s10 + $0x60] sm:$0xff]
  %v1373 = vld [vmem:[%s10 + $0x68] sm:$0xff]
  %v1374 = vld [vmem:[%s10 + $0x70] sm:$0xff]
  %v1375 = vld [vmem:[%s10 + $0x78] sm:$0xff]
  %1376 = vmatprep.subr.mxu0 0.0
  %1377 = vmatpush1.xpose.msra.mxu0 0.0
  %1378 = vmatprep.subr.mxu0 0.0
  %1379 = vmatpush1.xpose.msra.mxu0 0.0
  %1380 = vmatprep.subr.mxu0 0.0
  %1381 = vmatpush1.xpose.msra.mxu0 0.0
  %1382 = vmatprep.subr.mxu0 0.0
  %1383 = vmatpush1.xpose.msra.mxu0 0.0
  %1384 = vmatprep.subr.mxu0 0.0
  %1385 = vmatpush1.xpose.msra.mxu0 0.0
  %1386 = vmatprep.subr.mxu0 0.0
  %1387 = vmatpush1.xpose.msra.mxu0 0.0
  %1388 = vmatprep.subr.mxu0 0.0
  %1389 = vmatpush1.xpose.msra.mxu0 0.0
  %1390 = vmatprep.subr.mxu0 0.0
  %1391 = vmatpush1.xpose.msra.mxu0 0.0
  %1392 = vmatprep.subr.mxu0 0.0
  %1393 = vmatpush1.xpose.msra.mxu0 0.0
  %1394 = vmatprep.subr.mxu0 0.0
  %1395 = vmatpush1.xpose.msra.mxu0 0.0
  %1396 = vmatprep.subr.mxu0 0.0
  %1397 = vmatpush1.xpose.msra.mxu0 0.0
  %1398 = vmatprep.subr.mxu0 0.0
  %1399 = vmatpush1.xpose.msra.mxu0 0.0
  %1400 = vmatprep.subr.mxu0 0.0
  %1401 = vmatpush1.xpose.msra.mxu0 0.0
  %1402 = vmatprep.subr.mxu0 0.0
  %1403 = vmatpush1.xpose.msra.mxu0 0.0
  %1404 = vmatprep.subr.mxu0 0.0
  %1405 = vmatpush1.xpose.msra.mxu0 %v710
  %1406 = vmatprep.subr.mxu0 0.0
  %1407 = vmatpush1.xpose.msra.mxu0 %v706
  %1408 = vmatprep.subr.mxu0 0.0
  %1409 = vmatpush2.xpose.msra.mxu0 0.0
  %1410 = vmatprep.subr.mxu0 0.0
  %1411 = vmatpush2.xpose.msra.mxu0 0.0
  %1412 = vmatprep.subr.mxu0 0.0
  %1413 = vmatpush2.xpose.msra.mxu0 0.0
  %1414 = vmatprep.subr.mxu0 0.0
  %1415 = vmatpush2.xpose.msra.mxu0 0.0
  %1416 = vmatprep.subr.mxu0 0.0
  %1417 = vmatpush2.xpose.msra.mxu0 0.0
  %1418 = vmatprep.subr.mxu0 0.0
  %1419 = vmatpush2.xpose.msra.mxu0 0.0
  %1420 = vmatprep.subr.mxu0 0.0
  %1421 = vmatpush2.xpose.msra.mxu0 0.0
  %1422 = vmatprep.subr.mxu0 0.0
  %1423 = vmatpush2.xpose.msra.mxu0 0.0
  %1424 = vmatprep.subr.mxu0 0.0
  %1425 = vmatpush2.xpose.msra.mxu0 0.0
  %1426 = vmatprep.subr.mxu0 0.0
  %1427 = vmatpush2.xpose.msra.mxu0 0.0
  %1428 = vmatprep.subr.mxu0 0.0
  %1429 = vmatpush2.xpose.msra.mxu0 0.0
  %1430 = vmatprep.subr.mxu0 0.0
  %1431 = vmatpush2.xpose.msra.mxu0 0.0
  %1432 = vmatprep.subr.mxu0 0.0
  %1433 = vmatpush2.xpose.msra.mxu0 0.0
  %1434 = vmatprep.subr.mxu0 0.0
  %1435 = vmatpush2.xpose.msra.mxu0 0.0
  %1436 = vmatprep.subr.mxu0 0.0
  %1437 = vmatpush2.xpose.msra.mxu0 0.0
  %1438 = vmatprep.subr.mxu0 0.0
  %1439 = vmatpush2.xpose.msra.mxu0 0.0
  %1440 = vmatprep.mubr.f32.mxu0 0.0
  %1441 = vmatmul.mubr.f32.gmra.mxu0 %v248
  %v1442 = vpop.f32.mrf.mxu0
  %v1443 = vadd.f32 0.0, %v1442
  %v1444 = vpop.f32.mrf.mxu0
  %1445 = vdwg.mxu0
  %v1446 = vsel %vm784, %v1443, -inf
  %1447 = vmax.xlane.f32.xlu0 %v1446
  %v1448 = vpop.xlane.xlu0 %1447
  %v1449 = vsub.f32 %v1443, %v1448
  %v1450 = vmul.f32 %v1449, 1.442695
  %v1451 = vpow.pop %v1450
  %v1452 = vsel %vm784, %v1451, 0.0
  %1453 = vadd.xlane.f32.xlu0 %v1452
  %v1454 = vpop.xlane.xlu0 %1453
  %v1455 = vrcp.pop %v1454
  %v1456 = vmul.f32 1.0, %v1455
  %v1457 = vmul.f32 %v1451, %v1456
  %v1459 = vsel %vm784, %v1457, 0
  %1461 = vmatprep.subr.mxu0 0.0
  %1462 = vmatpush1.msra.mxu0 0.0
  %1463 = vmatprep.subr.mxu0 0.0
  %1464 = vmatpush1.msra.mxu0 0.0
  %1465 = vmatprep.subr.mxu0 0.0
  %1466 = vmatpush1.msra.mxu0 0.0
  %1467 = vmatprep.subr.mxu0 0.0
  %1468 = vmatpush1.msra.mxu0 0.0
  %1469 = vmatprep.subr.mxu0 0.0
  %1470 = vmatpush1.msra.mxu0 0.0
  %1471 = vmatprep.subr.mxu0 0.0
  %1472 = vmatpush1.msra.mxu0 0.0
  %1473 = vmatprep.subr.mxu0 0.0
  %1474 = vmatpush1.msra.mxu0 0.0
  %1475 = vmatprep.subr.mxu0 0.0
  %1476 = vmatpush1.msra.mxu0 0.0
  %1477 = vmatprep.subr.mxu0 0.0
  %1478 = vmatpush1.msra.mxu0 0.0
  %1479 = vmatprep.subr.mxu0 0.0
  %1480 = vmatpush1.msra.mxu0 0.0
  %1481 = vmatprep.subr.mxu0 0.0
  %1482 = vmatpush1.msra.mxu0 0.0
  %1483 = vmatprep.subr.mxu0 0.0
  %1484 = vmatpush1.msra.mxu0 0.0
  %1485 = vmatprep.subr.mxu0 0.0
  %1486 = vmatpush1.msra.mxu0 0.0
  %1487 = vmatprep.subr.mxu0 0.0
  %1488 = vmatpush1.msra.mxu0 0.0
  %1489 = vmatprep.subr.mxu0 0.0
  %1490 = vmatpush1.msra.mxu0 %v712
  %1491 = vmatprep.subr.mxu0 0.0
  %1492 = vmatpush1.msra.mxu0 %v708
  %1493 = vmatprep.subr.mxu0 0.0
  %1494 = vmatpush2.msra.mxu0 0.0
  %1495 = vmatprep.subr.mxu0 0.0
  %1496 = vmatpush2.msra.mxu0 0.0
  %1497 = vmatprep.subr.mxu0 0.0
  %1498 = vmatpush2.msra.mxu0 0.0
  %1499 = vmatprep.subr.mxu0 0.0
  %1500 = vmatpush2.msra.mxu0 0.0
  %1501 = vmatprep.subr.mxu0 0.0
  %1502 = vmatpush2.msra.mxu0 0.0
  %1503 = vmatprep.subr.mxu0 0.0
  %1504 = vmatpush2.msra.mxu0 0.0
  %1505 = vmatprep.subr.mxu0 0.0
  %1506 = vmatpush2.msra.mxu0 0.0
  %1507 = vmatprep.subr.mxu0 0.0
  %1508 = vmatpush2.msra.mxu0 0.0
  %1509 = vmatprep.subr.mxu0 0.0
  %1510 = vmatpush2.msra.mxu0 0.0
  %1511 = vmatprep.subr.mxu0 0.0
  %1512 = vmatpush2.msra.mxu0 0.0
  %1513 = vmatprep.subr.mxu0 0.0
  %1514 = vmatpush2.msra.mxu0 0.0
  %1515 = vmatprep.subr.mxu0 0.0
  %1516 = vmatpush2.msra.mxu0 0.0
  %1517 = vmatprep.subr.mxu0 0.0
  %1518 = vmatpush2.msra.mxu0 0.0
  %1519 = vmatprep.subr.mxu0 0.0
  %1520 = vmatpush2.msra.mxu0 0.0
  %1521 = vmatprep.subr.mxu0 0.0
  %1522 = vmatpush2.msra.mxu0 0.0
  %1523 = vmatprep.subr.mxu0 0.0
  %1524 = vmatpush2.msra.mxu0 0.0
  %1525 = vmatprep.mubr.f32.mxu0 0.0
  %1526 = vmatmul.mubr.f32.gmra.mxu0 %v1459
  %v1527 = vpop.f32.mrf.mxu0
  %v1528 = vadd.f32 0.0, %v1527
  %v1529 = vpop.f32.mrf.mxu0
  %1530 = vdwg.mxu0
  %v1531 = vld [vmem:[%s10 + $0x80] sm:$0xff]
  %v1532 = vld [vmem:[%s10 + $0x88] sm:$0xff]
  %v1533 = vld [vmem:[%s10 + $0x90] sm:$0xff]
  %v1534 = vld [vmem:[%s10 + $0x98] sm:$0xff]
  %v1535 = vld [vmem:[%s10 + $0xa0] sm:$0xff]
  %v1536 = vld [vmem:[%s10 + $0xa8] sm:$0xff]
  %v1537 = vld [vmem:[%s10 + $0xb0] sm:$0xff]
  %v1538 = vld [vmem:[%s10 + $0xb8] sm:$0xff]
  %v1539 = vld [vmem:[%s10 + $0xc0] sm:$0xff]
  %v1540 = vld [vmem:[%s10 + $0xc8] sm:$0xff]
  %v1541 = vld [vmem:[%s10 + $0xd0] sm:$0xff]
  %v1542 = vld [vmem:[%s10 + $0xd8] sm:$0xff]
  %v1543 = vld [vmem:[%s10 + $0xe0] sm:$0xff]
  %v1544 = vld [vmem:[%s10 + $0xe8] sm:$0xff]
  %v1545 = vld [vmem:[%s10 + $0xf0] sm:$0xff]
  %v1546 = vld [vmem:[%s10 + $0xf8] sm:$0xff]
  %1547 = vmatprep.subr.mxu0 0.0
  %1548 = vmatpush1.msra.mxu0 %v1546
  %1549 = vmatprep.subr.mxu0 0.0
  %1550 = vmatpush1.msra.mxu0 %v1545
  %1551 = vmatprep.subr.mxu0 0.0
  %1552 = vmatpush1.msra.mxu0 %v1544
  %1553 = vmatprep.subr.mxu0 0.0
  %1554 = vmatpush1.msra.mxu0 %v1543
  %1555 = vmatprep.subr.mxu0 0.0
  %1556 = vmatpush1.msra.mxu0 %v1542
  %1557 = vmatprep.subr.mxu0 0.0
  %1558 = vmatpush1.msra.mxu0 %v1541
  %1559 = vmatprep.subr.mxu0 0.0
  %1560 = vmatpush1.msra.mxu0 %v1540
  %1561 = vmatprep.subr.mxu0 0.0
  %1562 = vmatpush1.msra.mxu0 %v1539
  %1563 = vmatprep.subr.mxu0 0.0
  %1564 = vmatpush1.msra.mxu0 %v1538
  %1565 = vmatprep.subr.mxu0 0.0
  %1566 = vmatpush1.msra.mxu0 %v1537
  %1567 = vmatprep.subr.mxu0 0.0
  %1568 = vmatpush1.msra.mxu0 %v1536
  %1569 = vmatprep.subr.mxu0 0.0
  %1570 = vmatpush1.msra.mxu0 %v1535
  %1571 = vmatprep.subr.mxu0 0.0
  %1572 = vmatpush1.msra.mxu0 %v1534
  %1573 = vmatprep.subr.mxu0 0.0
  %1574 = vmatpush1.msra.mxu0 %v1533
  %1575 = vmatprep.subr.mxu0 0.0
  %1576 = vmatpush1.msra.mxu0 %v1532
  %1577 = vmatprep.subr.mxu0 0.0
  %1578 = vmatpush1.msra.mxu0 %v1531
  %1579 = vmatprep.subr.mxu0 0.0
  %1580 = vmatpush2.msra.mxu0 0.0
  %1581 = vmatprep.subr.mxu0 0.0
  %1582 = vmatpush2.msra.mxu0 0.0
  %1583 = vmatprep.subr.mxu0 0.0
  %1584 = vmatpush2.msra.mxu0 0.0
  %1585 = vmatprep.subr.mxu0 0.0
  %1586 = vmatpush2.msra.mxu0 0.0
  %1587 = vmatprep.subr.mxu0 0.0
  %1588 = vmatpush2.msra.mxu0 0.0
  %1589 = vmatprep.subr.mxu0 0.0
  %1590 = vmatpush2.msra.mxu0 0.0
  %1591 = vmatprep.subr.mxu0 0.0
  %1592 = vmatpush2.msra.mxu0 0.0
  %1593 = vmatprep.subr.mxu0 0.0
  %1594 = vmatpush2.msra.mxu0 0.0
  %1595 = vmatprep.subr.mxu0 0.0
  %1596 = vmatpush2.msra.mxu0 0.0
  %1597 = vmatprep.subr.mxu0 0.0
  %1598 = vmatpush2.msra.mxu0 0.0
  %1599 = vmatprep.subr.mxu0 0.0
  %1600 = vmatpush2.msra.mxu0 0.0
  %1601 = vmatprep.subr.mxu0 0.0
  %1602 = vmatpush2.msra.mxu0 0.0
  %1603 = vmatprep.subr.mxu0 0.0
  %1604 = vmatpush2.msra.mxu0 0.0
  %1605 = vmatprep.subr.mxu0 0.0
  %1606 = vmatpush2.msra.mxu0 0.0
  %1607 = vmatprep.subr.mxu0 0.0
  %1608 = vmatpush2.msra.mxu0 0.0
  %1609 = vmatprep.subr.mxu0 0.0
  %1610 = vmatpush2.msra.mxu0 0.0
  %1611 = vmatprep.mubr.f32.mxu0 0.0
  %1612 = vmatmul.mubr.f32.gmra.mxu0 %v1528
  %v1613 = vpop.f32.mrf.mxu0
  %v1614 = vadd.f32 0.0, %v1613
  %v1615 = vpop.f32.mrf.mxu0
  %1616 = vdwg.mxu0
  %1617 = vmatprep.subr.mxu0 0.0
  %1618 = vmatpush1.msra.mxu0 %v1375
  %1619 = vmatprep.subr.mxu0 0.0
  %1620 = vmatpush1.msra.mxu0 %v1374
  %1621 = vmatprep.subr.mxu0 0.0
  %1622 = vmatpush1.msra.mxu0 %v1373
  %1623 = vmatprep.subr.mxu0 0.0
  %1624 = vmatpush1.msra.mxu0 %v1372
  %1625 = vmatprep.subr.mxu0 0.0
  %1626 = vmatpush1.msra.mxu0 %v1371
  %1627 = vmatprep.subr.mxu0 0.0
  %1628 = vmatpush1.msra.mxu0 %v1370
  %1629 = vmatprep.subr.mxu0 0.0
  %1630 = vmatpush1.msra.mxu0 %v1369
  %1631 = vmatprep.subr.mxu0 0.0
  %1632 = vmatpush1.msra.mxu0 %v1368
  %1633 = vmatprep.subr.mxu0 0.0
  %1634 = vmatpush1.msra.mxu0 %v1367
  %1635 = vmatprep.subr.mxu0 0.0
  %1636 = vmatpush1.msra.mxu0 %v1366
  %1637 = vmatprep.subr.mxu0 0.0
  %1638 = vmatpush1.msra.mxu0 %v1365
  %1639 = vmatprep.subr.mxu0 0.0
  %1640 = vmatpush1.msra.mxu0 %v1364
  %1641 = vmatprep.subr.mxu0 0.0
  %1642 = vmatpush1.msra.mxu0 %v1363
  %1643 = vmatprep.subr.mxu0 0.0
  %1644 = vmatpush1.msra.mxu0 %v1362
  %1645 = vmatprep.subr.mxu0 0.0
  %1646 = vmatpush1.msra.mxu0 %v1361
  %1647 = vmatprep.subr.mxu0 0.0
  %1648 = vmatpush1.msra.mxu0 %v1360
  %1649 = vmatprep.subr.mxu0 0.0
  %1650 = vmatpush2.msra.mxu0 0.0
  %1651 = vmatprep.subr.mxu0 0.0
  %1652 = vmatpush2.msra.mxu0 0.0
  %1653 = vmatprep.subr.mxu0 0.0
  %1654 = vmatpush2.msra.mxu0 0.0
  %1655 = vmatprep.subr.mxu0 0.0
  %1656 = vmatpush2.msra.mxu0 0.0
  %1657 = vmatprep.subr.mxu0 0.0
  %1658 = vmatpush2.msra.mxu0 0.0
  %1659 = vmatprep.subr.mxu0 0.0
  %1660 = vmatpush2.msra.mxu0 0.0
  %1661 = vmatprep.subr.mxu0 0.0
  %1662 = vmatpush2.msra.mxu0 0.0
  %1663 = vmatprep.subr.mxu0 0.0
  %1664 = vmatpush2.msra.mxu0 0.0
  %1665 = vmatprep.subr.mxu0 0.0
  %1666 = vmatpush2.msra.mxu0 0.0
  %1667 = vmatprep.subr.mxu0 0.0
  %1668 = vmatpush2.msra.mxu0 0.0
  %1669 = vmatprep.subr.mxu0 0.0
  %1670 = vmatpush2.msra.mxu0 0.0
  %1671 = vmatprep.subr.mxu0 0.0
  %1672 = vmatpush2.msra.mxu0 0.0
  %1673 = vmatprep.subr.mxu0 0.0
  %1674 = vmatpush2.msra.mxu0 0.0
  %1675 = vmatprep.subr.mxu0 0.0
  %1676 = vmatpush2.msra.mxu0 0.0
  %1677 = vmatprep.subr.mxu0 0.0
  %1678 = vmatpush2.msra.mxu0 0.0
  %1679 = vmatprep.subr.mxu0 0.0
  %1680 = vmatpush2.msra.mxu0 0.0
  %1681 = vmatprep.mubr.f32.mxu0 0.0
  %1682 = vmatmul.mubr.f32.gmra.mxu0 %v1357
  %v1683 = vpop.f32.mrf.mxu0
  %v1684 = vadd.f32 %v1614, %v1683
  %v1685 = vpop.f32.mrf.mxu0
  %1686 = vdwg.mxu0
  %v1687 = vadd.f32 %v1684, %v1201
  %1688 = vst [vmem:[%s12 + $0x8] sm:$0xff] %v1687
  // Predicated region
  $region50: #{cross_attention_pallas.1} parent=0 // pred_check
    _
  $region51: #{cross_attention_pallas.1} parent=0 // pred_check_branch
    %1690 = sbr.rel (0) target = $region53
  $region52: #{cross_attention_pallas.1} parent=0 // pred_region
    _
  $region53: #{cross_attention_pallas.1} parent=0 // pred_fallthru
    _
  // Predicated region
  $region54: #{cross_attention_pallas.1} parent=0 // pred_check
    _
  $region55: #{cross_attention_pallas.1} parent=0 // pred_check_branch
    %1692 = sbr.rel (0) target = $region57
  $region56: #{cross_attention_pallas.1} parent=0 // pred_region
    _
  $region57: #{cross_attention_pallas.1} parent=0 // pred_fallthru
    _

</llo_original>
